<compile_context>
chip_gen: v5e
topology: v5e:2x2
jax: 0.10.0
libtpu: 0.0.40
codegen_flags: <defaults>
</compile_context>

<pallas_src>
import math

import numpy as np
import jax
import jax.numpy as jnp
from jax.experimental import pallas as pl
from jax.experimental.pallas import tpu as pltpu

_MAX_TILE_B = 128  # per-grid-step batch slab (VMEM-safe on v5e / v6e / v7x)


def _pick_tile_b(batch):
    """Adaptive batch tile: big slabs, but keep >=2 grid steps for v7x's two cores."""
    bp8 = ((batch + 7) // 8) * 8
    if bp8 <= 8:
        return 8
    half = (((bp8 // 2) + 7) // 8) * 8
    return max(8, min(_MAX_TILE_B, half))


# ----------------------------------------------------------------------------
# Fused Pallas kernel
# ----------------------------------------------------------------------------
def _classical_net_kernel(x_ref, t1_ref, b1_ref, t2_ref, b2_ref, g_ref,
                          fc1b_ref, fc2w_ref, tail_ref, o_ref):
    f32 = jnp.float32
    bf16 = jnp.bfloat16
    tb = x_ref.shape[0]

    x = x_ref[...]                                        # (TB, 28, 28) f32

    # ---- conv1 + bias + ReLU -------------------------------------------------
    # Stack the 5 kernel-row taps along K (im2col in-register), flatten (batch,row)
    # into M (24 % 8 == 0 -> layout-free reshape), one bf16 MXU matmul, f32 accum.
    lhs1 = jnp.concatenate([x[:, kh:kh + 24, :] for kh in range(5)], axis=-1)
    y1 = jnp.dot(lhs1.reshape(tb * 24, 140).astype(bf16), t1_ref[...],
                 preferred_element_type=f32).reshape(tb, 24, 48)
    y1 = jnp.maximum(y1 + b1_ref[...], 0.0)               # lanes = (out_ch(2), col(24))

    # ---- max-pool 2x2 #1: stride-1 window maxima; stride-2 folded into T2 -----
    # Odd rows / odd lanes of p1 are cross-window/cross-channel garbage (never read).
    a1 = jnp.maximum(y1[:, 0:23, :], y1[:, 1:24, :])
    p1 = jnp.maximum(a1[:, :, 0:47], a1[:, :, 1:48])      # (TB, 23, 47)
    p1 = jnp.concatenate([p1, jnp.zeros((tb, 1, 47), f32)], axis=1)  # pad -> 24 rows

    # ---- conv2 + bias + ReLU ---------------------------------------------------
    # 5 taps stacked along K again; 16-row slabs keep the M-flatten sublane-aligned.
    # Valid conv2 outputs live at even rows of q; lanes = (out_ch(16), col(8)) = 128.
    lhs2 = jnp.concatenate([p1[:, 2 * kh:2 * kh + 16, :] for kh in range(5)], axis=-1)
    q = jnp.dot(lhs2.reshape(tb * 16, 235).astype(bf16), t2_ref[...],
                preferred_element_type=f32).reshape(tb, 16, 128)
    q = jnp.maximum(q + b2_ref[...], 0.0)

    # ---- max-pool 2x2 #2: stride-1 window maxima; subsample folded into G ------
    a2 = jnp.maximum(q[:, 0:13, :], q[:, 2:15, :])        # valid at rows 4u
    m2 = jnp.maximum(a2[:, :, 0:127], a2[:, :, 1:128])    # (TB, 13, 127)

    # ---- fc1 + ReLU: one K=508 contraction (subsample + NCHW flatten in G) -----
    m2cat = jnp.concatenate([m2[:, 4 * u, :] for u in range(4)], axis=-1)  # (TB, 508)
    h = jnp.dot(m2cat.astype(bf16), g_ref[...], preferred_element_type=f32)
    h = jnp.maximum(h + fc1b_ref[...], 0.0)               # (TB, 64) f32

    # ---- fc2 (64->2) + ReLU on the VPU, fc3∘fc4 folded affine, cat(y, 1-y) -----
    w2 = fc2w_ref[...]                                    # (2, 64) f32
    z0 = jnp.maximum(jnp.sum(h * w2[0], axis=-1, keepdims=True) + tail_ref[0], 0.0)
    z1 = jnp.maximum(jnp.sum(h * w2[1], axis=-1, keepdims=True) + tail_ref[1], 0.0)
    y = z0 * tail_ref[2] + z1 * tail_ref[3] + tail_ref[4]     # (TB, 1)

    col = jax.lax.broadcasted_iota(jnp.int32, o_ref.shape, 1)
    o_ref[...] = jnp.where(col == 0, y, jnp.where(col == 1, 1.0 - y, 0.0))


# ----------------------------------------------------------------------------
# Wrapper: one gridded pallas_call over batch tiles
# ----------------------------------------------------------------------------
def _pallas_forward(x_nchw, kp):
    b = x_nchw.shape[0]
    x = x_nchw.reshape(b, 28, 28).astype(jnp.float32)     # squeeze CI=1
    tile_b = _pick_tile_b(b)
    b_pad = ((b + tile_b - 1) // tile_b) * tile_b
    if b_pad != b:
        x = jnp.pad(x, ((0, b_pad - b), (0, 0), (0, 0)))

    out = pl.pallas_call(
        _classical_net_kernel,
        out_shape=jax.ShapeDtypeStruct((b_pad, 128), jnp.float32),
        grid=(b_pad // tile_b,),
        in_specs=[
            pl.BlockSpec((tile_b, 28, 28), lambda i: (i, 0, 0)),    # input tile
            pl.BlockSpec((140, 48), lambda i: (0, 0)),              # conv1 Toeplitz (bf16)
            pl.BlockSpec((1, 48), lambda i: (0, 0)),                # conv1 bias row
            pl.BlockSpec((235, 128), lambda i: (0, 0)),             # conv2 Toeplitz (bf16)
            pl.BlockSpec((1, 128), lambda i: (0, 0)),               # conv2 bias row
            pl.BlockSpec((508, 64), lambda i: (0, 0)),              # fc1 folded weight (bf16)
            pl.BlockSpec((1, 64), lambda i: (0, 0)),                # fc1 bias
            pl.BlockSpec((2, 64), lambda i: (0, 0)),                # fc2 weight
            pl.BlockSpec(memory_space=pltpu.MemorySpace.SMEM),      # scalar tail
        ],
        out_specs=pl.BlockSpec((tile_b, 128), lambda i: (i, 0)),    # lane-dense store
        compiler_params=pltpu.CompilerParams(
            dimension_semantics=("parallel",),
            vmem_limit_bytes=32 * 1024 * 1024),
    )(x, kp["t1"], kp["b1row"], kp["t2"], kp["b2row"], kp["g_fc1"],
      kp["fc1b"], kp["fc2w"], kp["tail"])
    return out[:b, :2]


classical_net_pallas = jax.jit(_pallas_forward)


# ----------------------------------------------------------------------------
# Offline parameter folding (host side, one-time)
# ----------------------------------------------------------------------------
def kernel_params(p):
    """Fold PyTorch-convention parameters into kernel-friendly matmul matrices."""
    w1 = np.asarray(p["conv1_w"], np.float32)   # (2, 1, 5, 5)
    b1 = np.asarray(p["conv1_b"], np.float32)
    w2 = np.asarray(p["conv2_w"], np.float32)   # (16, 2, 5, 5)
    b2 = np.asarray(p["conv2_b"], np.float32)
    fc1_w = np.asarray(p["fc1_w"], np.float32)  # (64, 256)
    fc1_b = np.asarray(p["fc1_b"], np.float32)
    fc2_w = np.asarray(p["fc2_w"], np.float32)  # (2, 64)
    fc2_b = np.asarray(p["fc2_b"], np.float32)
    fc3_w = np.asarray(p["fc3_w"], np.float32)  # (2, 2)
    fc3_b = np.asarray(p["fc3_b"], np.float32)
    fc4_w = np.asarray(p["fc4_w"], np.float32)  # (1, 2)
    fc4_b = np.asarray(p["fc4_b"], np.float32)

    # conv1, taps stacked along K: y1[b,r,co*24+c] = sum_{kh,k} x[b,r+kh,k] T1[kh*28+k, co*24+c].
    t1 = np.zeros((140, 48), np.float32)
    for kh in range(5):
        for co in range(2):
            for c in range(24):
                for kw in range(5):
                    t1[kh * 28 + c + kw, co * 24 + c] = w1[co, 0, kh, kw]
    b1row = np.zeros((1, 48), np.float32)
    for co in range(2):
        b1row[0, co * 24:(co + 1) * 24] = b1[co]

    # conv2 with pool-1 subsample folded in: input lane lp = ci*24 + 2*(C+kw) of the
    # stride-1 pooled grid, output lane = co*8 + C; valid q rows are the even ones.
    t2 = np.zeros((235, 128), np.float32)
    for kh in range(5):
        for co in range(16):
            for cc in range(8):
                for ci in range(2):
                    for kw in range(5):
                        t2[kh * 47 + ci * 24 + 2 * (cc + kw), co * 8 + cc] = w2[co, ci, kh, kw]
    b2row = np.zeros((1, 128), np.float32)
    for co in range(16):
        b2row[0, co * 8:(co + 1) * 8] = b2[co]

    # fc1 with pool-2 subsample + NCHW flatten folded in, 4 pooled rows stacked along K:
    # h[b] = concat_u m2[b,4u,:] @ G + fc1_b, lane co*8+2t <-> flat index co*16+u*4+t.
    g = np.zeros((508, 64), np.float32)
    for u in range(4):
        for co in range(16):
            for t in range(4):
                g[u * 127 + co * 8 + 2 * t, :] = fc1_w[:, co * 16 + u * 4 + t]

    # fc3 and fc4 folded exactly into one affine map on relu(fc2(.)).
    w34 = fc3_w.T @ fc4_w.T                      # (2, 1)
    b34 = fc3_b @ fc4_w.T + fc4_b                # (1,)
    tail = np.array([fc2_b[0], fc2_b[1], w34[0, 0], w34[1, 0], b34[0],
                     0.0, 0.0, 0.0], np.float32)

    return {
        "t1": jnp.asarray(t1, jnp.bfloat16), "b1row": jnp.asarray(b1row),
        "t2": jnp.asarray(t2, jnp.bfloat16), "b2row": jnp.asarray(b2row),
        "g_fc1": jnp.asarray(g, jnp.bfloat16),
        "fc1b": jnp.asarray(fc1_b.reshape(1, 64)),
        "fc2w": jnp.asarray(fc2_w), "tail": jnp.asarray(tail),
    }


# ----------------------------------------------------------------------------
# Deterministic PyTorch-default-like init and pure-JAX reference
# ----------------------------------------------------------------------------
def init_params(key):
    ks = jax.random.split(key, 12)

    def u(k, shape, fan_in):
        bound = 1.0 / math.sqrt(fan_in)
        return jax.random.uniform(k, shape, jnp.float32, -bound, bound)

    return {
        "conv1_w": u(ks[0], (2, 1, 5, 5), 25),  "conv1_b": u(ks[1], (2,), 25),
        "conv2_w": u(ks[2], (16, 2, 5, 5), 50), "conv2_b": u(ks[3], (16,), 50),
        "fc1_w": u(ks[4], (64, 256), 256),      "fc1_b": u(ks[5], (64,), 256),
        "fc2_w": u(ks[6], (2, 64), 64),         "fc2_b": u(ks[7], (2,), 64),
        "fc3_w": u(ks[8], (2, 2), 2),           "fc3_b": u(ks[9], (2,), 2),
        "fc4_w": u(ks[10], (1, 2), 2),          "fc4_b": u(ks[11], (1,), 2),
    }


def _reference_forward(x_nchw, p):
    hi = jax.lax.Precision.HIGHEST
    y = jax.lax.conv_general_dilated(
        x_nchw, p["conv1_w"], window_strides=(1, 1), padding="VALID",
        dimension_numbers=("NCHW", "OIHW", "NCHW"), precision=hi)
    y = jnp.maximum(y + p["conv1_b"][None, :, None, None], 0.0)
    y = y.reshape(y.shape[0], 2, 12, 2, 12, 2).max(axis=(3, 5))
    y = jax.lax.conv_general_dilated(
        y, p["conv2_w"], window_strides=(1, 1), padding="VALID",
        dimension_numbers=("NCHW", "OIHW", "NCHW"), precision=hi)
    y = jnp.maximum(y + p["conv2_b"][None, :, None, None], 0.0)
    y = y.reshape(y.shape[0], 16, 4, 2, 4, 2).max(axis=(3, 5))
    # TODO(synk): nn.Dropout2d is eval-mode identity here (inference semantics).
    flat = y.reshape(y.shape[0], -1)
    h = jnp.maximum(jnp.dot(flat, p["fc1_w"].T, precision=hi) + p["fc1_b"], 0.0)
    h = jnp.maximum(jnp.dot(h, p["fc2_w"].T, precision=hi) + p["fc2_b"], 0.0)
    h = jnp.dot(h, p["fc3_w"].T, precision=hi) + p["fc3_b"]
    yy = jnp.dot(h, p["fc4_w"].T, precision=hi) + p["fc4_b"]
    return jnp.concatenate([yy, 1.0 - yy], axis=-1)


classical_net_reference = jax.jit(_reference_forward)


# ----------------------------------------------------------------------------
if __name__ == "__main__":
    pkey, xkey = jax.random.split(jax.random.PRNGKey(0))
    params = init_params(pkey)
    kp = kernel_params(params)

    x = jax.random.normal(xkey, (2, 1, 28, 28), dtype=jnp.float32)

    out = jax.block_until_ready(classical_net_pallas(x, kp))
    ref = jax.block_until_ready(classical_net_reference(x, params))

    assert out.shape == (2, 2), out.shape
    # bf16 MXU operands with f32 accumulation: expect ~1e-3-level noise vs f32 reference.
    assert jnp.allclose(out, ref, rtol=3e-2, atol=3e-2), (out, ref)
    # cat(y, 1 - y): the two output columns sum to 1 (computed in f32 in-kernel).
    assert jnp.allclose(out.sum(axis=-1), 1.0, atol=1e-5)

    print("KERNEL_OK")
</pallas_src>

<mosaic_0001>
module attributes {stable_mosaic.version = 11 : i64} {
  func.func @_classical_net_kernel(%arg0: i32, %arg1: memref<8x28x28xf32, #tpu.memory_space<vmem>>, %arg2: memref<140x48xbf16, #tpu.memory_space<vmem>>, %arg3: memref<1x48xf32, #tpu.memory_space<vmem>>, %arg4: memref<235x128xbf16, #tpu.memory_space<vmem>>, %arg5: memref<1x128xf32, #tpu.memory_space<vmem>>, %arg6: memref<508x64xbf16, #tpu.memory_space<vmem>>, %arg7: memref<1x64xf32, #tpu.memory_space<vmem>>, %arg8: memref<2x64xf32, #tpu.memory_space<vmem>>, %arg9: memref<8xf32, #tpu.memory_space<smem>>, %arg10: memref<8x128xf32, #tpu.memory_space<vmem>>) attributes {dimension_semantics = [#tpu.dimension_semantics<parallel>], iteration_bounds = array<i64: 1>, scalar_prefetch = 0 : i64, scratch_operands = 0 : i64, tpu.core_type = #tpu.core_type<tc>, window_params = [{transform_indices = @transform_0, window_bounds = array<i64: 8, 28, 28>}, {pipeline_mode = #tpu.pipeline_mode<synchronous>, transform_indices = @transform_1, window_bounds = array<i64: 140, 48>}, {pipeline_mode = #tpu.pipeline_mode<synchronous>, transform_indices = @transform_2, window_bounds = array<i64: 1, 48>}, {pipeline_mode = #tpu.pipeline_mode<synchronous>, transform_indices = @transform_3, window_bounds = array<i64: 235, 128>}, {pipeline_mode = #tpu.pipeline_mode<synchronous>, transform_indices = @transform_4, window_bounds = array<i64: 1, 128>}, {pipeline_mode = #tpu.pipeline_mode<synchronous>, transform_indices = @transform_5, window_bounds = array<i64: 508, 64>}, {pipeline_mode = #tpu.pipeline_mode<synchronous>, transform_indices = @transform_6, window_bounds = array<i64: 1, 64>}, {pipeline_mode = #tpu.pipeline_mode<synchronous>, transform_indices = @transform_7, window_bounds = array<i64: 2, 64>}, {transform_indices = @transform_8, window_bounds = array<i64: 8>}, {transform_indices = @transform_9, window_bounds = array<i64: 8, 128>}]} {
    %c0 = arith.constant 0 : index
    %c0_0 = arith.constant 0 : index
    %c0_1 = arith.constant 0 : index
    %0 = vector.load %arg1[%c0, %c0_0, %c0_1] : memref<8x28x28xf32, #tpu.memory_space<vmem>>, vector<8x28x28xf32>
    %1 = vector.extract_strided_slice %0 {offsets = [0, 0, 0], sizes = [8, 24, 28], strides = [1, 1, 1]} : vector<8x28x28xf32> to vector<8x24x28xf32>
    %2 = vector.extract_strided_slice %0 {offsets = [0, 1, 0], sizes = [8, 24, 28], strides = [1, 1, 1]} : vector<8x28x28xf32> to vector<8x24x28xf32>
    %3 = vector.extract_strided_slice %0 {offsets = [0, 2, 0], sizes = [8, 24, 28], strides = [1, 1, 1]} : vector<8x28x28xf32> to vector<8x24x28xf32>
    %4 = vector.extract_strided_slice %0 {offsets = [0, 3, 0], sizes = [8, 24, 28], strides = [1, 1, 1]} : vector<8x28x28xf32> to vector<8x24x28xf32>
    %5 = vector.extract_strided_slice %0 {offsets = [0, 4, 0], sizes = [8, 24, 28], strides = [1, 1, 1]} : vector<8x28x28xf32> to vector<8x24x28xf32>
    %6 = tpu.concatenate %1, %2, %3, %4, %5 in 2 : vector<8x24x28xf32>, vector<8x24x28xf32>, vector<8x24x28xf32>, vector<8x24x28xf32>, vector<8x24x28xf32> -> vector<8x24x140xf32>
    %7 = vector.shape_cast %6 : vector<8x24x140xf32> to vector<192x140xf32>
    %8 = arith.truncf %7 : vector<192x140xf32> to vector<192x140xbf16>
    %c0_2 = arith.constant 0 : index
    %c0_3 = arith.constant 0 : index
    %9 = vector.load %arg2[%c0_2, %c0_3] : memref<140x48xbf16, #tpu.memory_space<vmem>>, vector<140x48xbf16>
    %cst = arith.constant dense<0.000000e+00> : vector<192x48xf32>
    %10 = tpu.matmul %8, %9, %cst {dimension_numbers = #tpu.dot_dimension_numbers<[1], [0], [0], [1], [0, 0, 1, 1], [], []>} : vector<192x140xbf16>, vector<140x48xbf16>, vector<192x48xf32> -> vector<192x48xf32>
    %11 = vector.shape_cast %10 : vector<192x48xf32> to vector<8x24x48xf32>
    %c0_4 = arith.constant 0 : index
    %c0_5 = arith.constant 0 : index
    %12 = vector.load %arg3[%c0_4, %c0_5] : memref<1x48xf32, #tpu.memory_space<vmem>>, vector<1x48xf32>
    %13 = vector.shape_cast %12 : vector<1x48xf32> to vector<1x1x48xf32>
    %14 = vector.broadcast %13 : vector<1x1x48xf32> to vector<8x24x48xf32>
    %15 = arith.addf %11, %14 : vector<8x24x48xf32>
    %cst_6 = arith.constant 0.000000e+00 : f32
    %16 = vector.broadcast %cst_6 : f32 to vector<8x24x48xf32>
    %17 = arith.maximumf %15, %16 : vector<8x24x48xf32>
    %18 = vector.extract_strided_slice %17 {offsets = [0, 0, 0], sizes = [8, 23, 48], strides = [1, 1, 1]} : vector<8x24x48xf32> to vector<8x23x48xf32>
    %19 = vector.extract_strided_slice %17 {offsets = [0, 1, 0], sizes = [8, 23, 48], strides = [1, 1, 1]} : vector<8x24x48xf32> to vector<8x23x48xf32>
    %20 = arith.maximumf %18, %19 : vector<8x23x48xf32>
    %21 = vector.extract_strided_slice %20 {offsets = [0, 0, 0], sizes = [8, 23, 47], strides = [1, 1, 1]} : vector<8x23x48xf32> to vector<8x23x47xf32>
    %22 = vector.extract_strided_slice %20 {offsets = [0, 0, 1], sizes = [8, 23, 47], strides = [1, 1, 1]} : vector<8x23x48xf32> to vector<8x23x47xf32>
    %23 = arith.maximumf %21, %22 : vector<8x23x47xf32>
    %cst_7 = arith.constant 0.000000e+00 : f32
    %24 = vector.broadcast %cst_7 : f32 to vector<8x1x47xf32>
    %25 = tpu.concatenate %23, %24 in 1 : vector<8x23x47xf32>, vector<8x1x47xf32> -> vector<8x24x47xf32>
    %26 = vector.extract_strided_slice %25 {offsets = [0, 0, 0], sizes = [8, 16, 47], strides = [1, 1, 1]} : vector<8x24x47xf32> to vector<8x16x47xf32>
    %27 = vector.extract_strided_slice %25 {offsets = [0, 2, 0], sizes = [8, 16, 47], strides = [1, 1, 1]} : vector<8x24x47xf32> to vector<8x16x47xf32>
    %28 = vector.extract_strided_slice %25 {offsets = [0, 4, 0], sizes = [8, 16, 47], strides = [1, 1, 1]} : vector<8x24x47xf32> to vector<8x16x47xf32>
    %29 = vector.extract_strided_slice %25 {offsets = [0, 6, 0], sizes = [8, 16, 47], strides = [1, 1, 1]} : vector<8x24x47xf32> to vector<8x16x47xf32>
    %30 = vector.extract_strided_slice %25 {offsets = [0, 8, 0], sizes = [8, 16, 47], strides = [1, 1, 1]} : vector<8x24x47xf32> to vector<8x16x47xf32>
    %31 = tpu.concatenate %26, %27, %28, %29, %30 in 2 : vector<8x16x47xf32>, vector<8x16x47xf32>, vector<8x16x47xf32>, vector<8x16x47xf32>, vector<8x16x47xf32> -> vector<8x16x235xf32>
    %32 = vector.shape_cast %31 : vector<8x16x235xf32> to vector<128x235xf32>
    %33 = arith.truncf %32 : vector<128x235xf32> to vector<128x235xbf16>
    %c0_8 = arith.constant 0 : index
    %c0_9 = arith.constant 0 : index
    %34 = vector.load %arg4[%c0_8, %c0_9] : memref<235x128xbf16, #tpu.memory_space<vmem>>, vector<235x128xbf16>
    %cst_10 = arith.constant dense<0.000000e+00> : vector<128x128xf32>
    %35 = tpu.matmul %33, %34, %cst_10 {dimension_numbers = #tpu.dot_dimension_numbers<[1], [0], [0], [1], [0, 0, 1, 1], [], []>} : vector<128x235xbf16>, vector<235x128xbf16>, vector<128x128xf32> -> vector<128x128xf32>
    %36 = vector.shape_cast %35 : vector<128x128xf32> to vector<8x16x128xf32>
    %c0_11 = arith.constant 0 : index
    %c0_12 = arith.constant 0 : index
    %37 = vector.load %arg5[%c0_11, %c0_12] : memref<1x128xf32, #tpu.memory_space<vmem>>, vector<1x128xf32>
    %38 = vector.shape_cast %37 : vector<1x128xf32> to vector<1x1x128xf32>
    %39 = vector.broadcast %38 : vector<1x1x128xf32> to vector<8x16x128xf32>
    %40 = arith.addf %36, %39 : vector<8x16x128xf32>
    %cst_13 = arith.constant 0.000000e+00 : f32
    %41 = vector.broadcast %cst_13 : f32 to vector<8x16x128xf32>
    %42 = arith.maximumf %40, %41 : vector<8x16x128xf32>
    %43 = vector.extract_strided_slice %42 {offsets = [0, 0, 0], sizes = [8, 13, 128], strides = [1, 1, 1]} : vector<8x16x128xf32> to vector<8x13x128xf32>
    %44 = vector.extract_strided_slice %42 {offsets = [0, 2, 0], sizes = [8, 13, 128], strides = [1, 1, 1]} : vector<8x16x128xf32> to vector<8x13x128xf32>
    %45 = arith.maximumf %43, %44 : vector<8x13x128xf32>
    %46 = vector.extract_strided_slice %45 {offsets = [0, 0, 0], sizes = [8, 13, 127], strides = [1, 1, 1]} : vector<8x13x128xf32> to vector<8x13x127xf32>
    %47 = vector.extract_strided_slice %45 {offsets = [0, 0, 1], sizes = [8, 13, 127], strides = [1, 1, 1]} : vector<8x13x128xf32> to vector<8x13x127xf32>
    %48 = arith.maximumf %46, %47 : vector<8x13x127xf32>
    %49 = vector.extract_strided_slice %48 {offsets = [0, 0, 0], sizes = [8, 1, 127], strides = [1, 1, 1]} : vector<8x13x127xf32> to vector<8x1x127xf32>
    %50 = vector.shape_cast %49 : vector<8x1x127xf32> to vector<8x127xf32>
    %51 = vector.extract_strided_slice %48 {offsets = [0, 4, 0], sizes = [8, 1, 127], strides = [1, 1, 1]} : vector<8x13x127xf32> to vector<8x1x127xf32>
    %52 = vector.shape_cast %51 : vector<8x1x127xf32> to vector<8x127xf32>
    %53 = vector.extract_strided_slice %48 {offsets = [0, 8, 0], sizes = [8, 1, 127], strides = [1, 1, 1]} : vector<8x13x127xf32> to vector<8x1x127xf32>
    %54 = vector.shape_cast %53 : vector<8x1x127xf32> to vector<8x127xf32>
    %55 = vector.extract_strided_slice %48 {offsets = [0, 12, 0], sizes = [8, 1, 127], strides = [1, 1, 1]} : vector<8x13x127xf32> to vector<8x1x127xf32>
    %56 = vector.shape_cast %55 : vector<8x1x127xf32> to vector<8x127xf32>
    %57 = tpu.concatenate %50, %52, %54, %56 in 1 : vector<8x127xf32>, vector<8x127xf32>, vector<8x127xf32>, vector<8x127xf32> -> vector<8x508xf32>
    %58 = arith.truncf %57 : vector<8x508xf32> to vector<8x508xbf16>
    %c0_14 = arith.constant 0 : index
    %c0_15 = arith.constant 0 : index
    %59 = vector.load %arg6[%c0_14, %c0_15] : memref<508x64xbf16, #tpu.memory_space<vmem>>, vector<508x64xbf16>
    %cst_16 = arith.constant dense<0.000000e+00> : vector<8x64xf32>
    %60 = tpu.matmul %58, %59, %cst_16 {dimension_numbers = #tpu.dot_dimension_numbers<[1], [0], [0], [1], [0, 0, 1, 1], [], []>} : vector<8x508xbf16>, vector<508x64xbf16>, vector<8x64xf32> -> vector<8x64xf32>
    %c0_17 = arith.constant 0 : index
    %c0_18 = arith.constant 0 : index
    %61 = vector.load %arg7[%c0_17, %c0_18] : memref<1x64xf32, #tpu.memory_space<vmem>>, vector<1x64xf32>
    %62 = vector.broadcast %61 : vector<1x64xf32> to vector<8x64xf32>
    %63 = arith.addf %60, %62 : vector<8x64xf32>
    %cst_19 = arith.constant 0.000000e+00 : f32
    %64 = vector.broadcast %cst_19 : f32 to vector<8x64xf32>
    %65 = arith.maximumf %63, %64 : vector<8x64xf32>
    %c0_20 = arith.constant 0 : index
    %c0_21 = arith.constant 0 : index
    %66 = vector.load %arg8[%c0_20, %c0_21] : memref<2x64xf32, #tpu.memory_space<vmem>>, vector<2x64xf32>
    %67 = vector.extract_strided_slice %66 {offsets = [0, 0], sizes = [1, 64], strides = [1, 1]} : vector<2x64xf32> to vector<1x64xf32>
    %68 = vector.shape_cast %67 : vector<1x64xf32> to vector<64xf32>
    %69 = vector.shape_cast %68 : vector<64xf32> to vector<1x64xf32>
    %70 = vector.broadcast %69 : vector<1x64xf32> to vector<8x64xf32>
    %71 = arith.mulf %65, %70 : vector<8x64xf32>
    %cst_22 = arith.constant dense<0.000000e+00> : vector<8xf32>
    %72 = vector.multi_reduction <add>, %71, %cst_22 [1] : vector<8x64xf32> to vector<8xf32>
    %73 = vector.shape_cast %72 : vector<8xf32> to vector<8x1xf32>
    %c0_23 = arith.constant 0 : index
    %74 = memref.load %arg9[%c0_23] : memref<8xf32, #tpu.memory_space<smem>>
    %75 = vector.broadcast %74 : f32 to vector<8x1xf32>
    %76 = arith.addf %73, %75 : vector<8x1xf32>
    %cst_24 = arith.constant 0.000000e+00 : f32
    %77 = vector.broadcast %cst_24 : f32 to vector<8x1xf32>
    %78 = arith.maximumf %76, %77 : vector<8x1xf32>
    %79 = vector.extract_strided_slice %66 {offsets = [1, 0], sizes = [1, 64], strides = [1, 1]} : vector<2x64xf32> to vector<1x64xf32>
    %80 = vector.shape_cast %79 : vector<1x64xf32> to vector<64xf32>
    %81 = vector.shape_cast %80 : vector<64xf32> to vector<1x64xf32>
    %82 = vector.broadcast %81 : vector<1x64xf32> to vector<8x64xf32>
    %83 = arith.mulf %65, %82 : vector<8x64xf32>
    %cst_25 = arith.constant dense<0.000000e+00> : vector<8xf32>
    %84 = vector.multi_reduction <add>, %83, %cst_25 [1] : vector<8x64xf32> to vector<8xf32>
    %85 = vector.shape_cast %84 : vector<8xf32> to vector<8x1xf32>
    %c1 = arith.constant 1 : index
    %86 = memref.load %arg9[%c1] : memref<8xf32, #tpu.memory_space<smem>>
    %87 = vector.broadcast %86 : f32 to vector<8x1xf32>
    %88 = arith.addf %85, %87 : vector<8x1xf32>
    %cst_26 = arith.constant 0.000000e+00 : f32
    %89 = vector.broadcast %cst_26 : f32 to vector<8x1xf32>
    %90 = arith.maximumf %88, %89 : vector<8x1xf32>
    %c2 = arith.constant 2 : index
    %91 = memref.load %arg9[%c2] : memref<8xf32, #tpu.memory_space<smem>>
    %92 = vector.broadcast %91 : f32 to vector<8x1xf32>
    %93 = arith.mulf %78, %92 : vector<8x1xf32>
    %c3 = arith.constant 3 : index
    %94 = memref.load %arg9[%c3] : memref<8xf32, #tpu.memory_space<smem>>
    %95 = vector.broadcast %94 : f32 to vector<8x1xf32>
    %96 = arith.mulf %90, %95 : vector<8x1xf32>
    %97 = arith.addf %93, %96 : vector<8x1xf32>
    %c4 = arith.constant 4 : index
    %98 = memref.load %arg9[%c4] : memref<8xf32, #tpu.memory_space<smem>>
    %99 = vector.broadcast %98 : f32 to vector<8x1xf32>
    %100 = arith.addf %97, %99 : vector<8x1xf32>
    %101 = tpu.iota {dimensions = array<i32: 1>} : vector<8x128xi32>
    %c0_i32 = arith.constant 0 : i32
    %102 = vector.broadcast %c0_i32 : i32 to vector<8x128xi32>
    %103 = arith.cmpi eq, %101, %102 : vector<8x128xi32>
    %c1_i32 = arith.constant 1 : i32
    %104 = vector.broadcast %c1_i32 : i32 to vector<8x128xi32>
    %105 = arith.cmpi eq, %101, %104 : vector<8x128xi32>
    %cst_27 = arith.constant 1.000000e+00 : f32
    %106 = vector.broadcast %cst_27 : f32 to vector<8x1xf32>
    %107 = arith.subf %106, %100 : vector<8x1xf32>
    %cst_28 = arith.constant 0.000000e+00 : f32
    %108 = vector.shape_cast %107 : vector<8x1xf32> to vector<8x1xf32>
    %109 = vector.broadcast %108 : vector<8x1xf32> to vector<8x128xf32>
    %110 = vector.broadcast %cst_28 : f32 to vector<8x128xf32>
    %111 = arith.select %105, %109, %110 : vector<8x128xi1>, vector<8x128xf32>
    %112 = vector.shape_cast %100 : vector<8x1xf32> to vector<8x1xf32>
    %113 = vector.broadcast %112 : vector<8x1xf32> to vector<8x128xf32>
    %114 = arith.select %103, %113, %111 : vector<8x128xi1>, vector<8x128xf32>
    %c0_29 = arith.constant 0 : index
    %c0_30 = arith.constant 0 : index
    %115 = vector.load %arg10[%c0_29, %c0_30] : memref<8x128xf32, #tpu.memory_space<vmem>>, vector<8x128xf32>
    tpu.vector_store %arg10[%c0_29, %c0_30], %114 {strides = array<i32>} : memref<8x128xf32, #tpu.memory_space<vmem>>, vector<8x128xf32>,
    return
  }
  func.func @transform_0(%arg0: i32) -> (i32, i32, i32) {
    %c0_i32 = arith.constant 0 : i32
    %c0_i32_0 = arith.constant 0 : i32
    %c0_i32_1 = arith.constant 0 : i32
    return %arg0, %c0_i32, %c0_i32_0 : i32, i32, i32
  }
  func.func @transform_1(%arg0: i32) -> (i32, i32) {
    %c0_i32 = arith.constant 0 : i32
    %c0_i32_0 = arith.constant 0 : i32
    %c0_i32_1 = arith.constant 0 : i32
    return %c0_i32, %c0_i32_0 : i32, i32
  }
  func.func @transform_2(%arg0: i32) -> (i32, i32) {
    %c0_i32 = arith.constant 0 : i32
    %c0_i32_0 = arith.constant 0 : i32
    %c0_i32_1 = arith.constant 0 : i32
    return %c0_i32, %c0_i32_0 : i32, i32
  }
  func.func @transform_3(%arg0: i32) -> (i32, i32) {
    %c0_i32 = arith.constant 0 : i32
    %c0_i32_0 = arith.constant 0 : i32
    %c0_i32_1 = arith.constant 0 : i32
    return %c0_i32, %c0_i32_0 : i32, i32
  }
  func.func @transform_4(%arg0: i32) -> (i32, i32) {
    %c0_i32 = arith.constant 0 : i32
    %c0_i32_0 = arith.constant 0 : i32
    %c0_i32_1 = arith.constant 0 : i32
    return %c0_i32, %c0_i32_0 : i32, i32
  }
  func.func @transform_5(%arg0: i32) -> (i32, i32) {
    %c0_i32 = arith.constant 0 : i32
    %c0_i32_0 = arith.constant 0 : i32
    %c0_i32_1 = arith.constant 0 : i32
    return %c0_i32, %c0_i32_0 : i32, i32
  }
  func.func @transform_6(%arg0: i32) -> (i32, i32) {
    %c0_i32 = arith.constant 0 : i32
    %c0_i32_0 = arith.constant 0 : i32
    %c0_i32_1 = arith.constant 0 : i32
    return %c0_i32, %c0_i32_0 : i32, i32
  }
  func.func @transform_7(%arg0: i32) -> (i32, i32) {
    %c0_i32 = arith.constant 0 : i32
    %c0_i32_0 = arith.constant 0 : i32
    %c0_i32_1 = arith.constant 0 : i32
    return %c0_i32, %c0_i32_0 : i32, i32
  }
  func.func @transform_8(%arg0: i32) -> i32 {
    %c0_i32 = arith.constant 0 : i32
    %c0_i32_0 = arith.constant 0 : i32
    return %c0_i32 : i32
  }
  func.func @transform_9(%arg0: i32) -> (i32, i32) {
    %c0_i32 = arith.constant 0 : i32
    %c0_i32_0 = arith.constant 0 : i32
    return %arg0, %c0_i32 : i32, i32
  }
}

</mosaic_0001>

<llo_original>
// kernel: _pallas_forward.1
$region0: #{_pallas_forward.1}
  #allocation0 [shape = 'u32[]', space=smem, size = 0x4, offset = 0x4, fixed_abs, tag = 'smem constant byte address 0x4 - core index']
  #allocation1 [shape = 'u32[72,128]{1,0:T(1,128)}', space=vmem, size = 0x9000, scoped, tag = 'internal scratch']
  %s0 = inlined_call_operand.vmem [shape: f32[8,28,28], index: 0, kind: input, shape index: {}]
  %s1 = inlined_call_operand.vmem [shape: bf16[140,48], index: 1, kind: input, shape index: {}]
  %s2 = inlined_call_operand.vmem [shape: f32[1,48], index: 2, kind: input, shape index: {}]
  %s3 = inlined_call_operand.vmem [shape: bf16[235,128], index: 3, kind: input, shape index: {}]
  %s4 = inlined_call_operand.vmem [shape: f32[1,128], index: 4, kind: input, shape index: {}]
  %s5 = inlined_call_operand.vmem [shape: bf16[508,64], index: 5, kind: input, shape index: {}]
  %s6 = inlined_call_operand.vmem [shape: f32[1,64], index: 6, kind: input, shape index: {}]
  %s7 = inlined_call_operand.vmem [shape: f32[2,64], index: 7, kind: input, shape index: {}]
  %s8 = inlined_call_operand.vmem [shape: f32[8], index: 8, kind: input, shape index: {}]
  %s9 = inlined_call_operand.vmem [shape: f32[8,128], index: 9, kind: output, shape index: {}]
  %s10 = sld [smem:[#allocation0]]
  $region50: #{_pallas_forward.1} parent=0
    _
  %s12 = ssub.s32 1, %s10
  %s13 = scalar_select 0, %s12, %s10
  $region1: #{_pallas_forward.1} parent=0
    #allocation2 [shape = 'u8[512]{0}', space=smem, size = 0x200, scoped, tag = 'input window, operand 8, single buffered']
    #allocation3 [shape = 's32[1]{0}', space=sflag, size = 0x4, scoped, tag = 'scoped memory for _pallas_forward.1']
    %14 = vsyncpa [#allocation3], 0
    // Predicated region
    $region2: #{_pallas_forward.1} parent=1 // pred_check
      _
    $region3: #{_pallas_forward.1} parent=1 // pred_check_branch
      %16 = sbr.rel (0) target = $region5
    $region4: #{_pallas_forward.1} parent=1 // pred_region
      _
    $region5: #{_pallas_forward.1} parent=1 // pred_fallthru
      _
    // Predicated region
    $region6: #{_pallas_forward.1} parent=1 // pred_check
      _
    $region7: #{_pallas_forward.1} parent=1 // pred_check_branch
      %18 = sbr.rel (0) target = $region9
    $region8: #{_pallas_forward.1} parent=1 // pred_region
      _
    $region9: #{_pallas_forward.1} parent=1 // pred_fallthru
      _
    // Predicated region
    $region10: #{_pallas_forward.1} parent=1 // pred_check
      _
    $region11: #{_pallas_forward.1} parent=1 // pred_check_branch
      %20 = sbr.rel (0) target = $region13
    $region12: #{_pallas_forward.1} parent=1 // pred_region
      _
    $region13: #{_pallas_forward.1} parent=1 // pred_fallthru
      _
    // Predicated region
    $region14: #{_pallas_forward.1} parent=1 // pred_check
      _
    $region15: #{_pallas_forward.1} parent=1 // pred_check_branch
      %22 = sbr.rel (0) target = $region17
    $region16: #{_pallas_forward.1} parent=1 // pred_region
      _
    $region17: #{_pallas_forward.1} parent=1 // pred_fallthru
      _
    // Predicated region
    $region18: #{_pallas_forward.1} parent=1 // pred_check
      _
    $region19: #{_pallas_forward.1} parent=1 // pred_check_branch
      %24 = sbr.rel (0) target = $region21
    $region20: #{_pallas_forward.1} parent=1 // pred_region
      _
    $region21: #{_pallas_forward.1} parent=1 // pred_fallthru
      _
    // Predicated region
    $region22: #{_pallas_forward.1} parent=1 // pred_check
      _
    $region23: #{_pallas_forward.1} parent=1 // pred_check_branch
      %26 = sbr.rel (0) target = $region25
    $region24: #{_pallas_forward.1} parent=1 // pred_region
      _
    $region25: #{_pallas_forward.1} parent=1 // pred_fallthru
      _
    // Predicated region
    $region26: #{_pallas_forward.1} parent=1 // pred_check
      _
    $region27: #{_pallas_forward.1} parent=1 // pred_check_branch
      %28 = sbr.rel (0) target = $region29
    $region28: #{_pallas_forward.1} parent=1 // pred_region
      _
    $region29: #{_pallas_forward.1} parent=1 // pred_fallthru
      _
    // Predicated region
    $region30: #{_pallas_forward.1} parent=1 // pred_check
      _
    $region31: #{_pallas_forward.1} parent=1 // pred_check_branch
      %30 = sbr.rel (0) target = $region33
    $region32: #{_pallas_forward.1} parent=1 // pred_region
      _
    $region33: #{_pallas_forward.1} parent=1 // pred_fallthru
      _
    // Predicated region
    $region34: #{_pallas_forward.1} parent=1 // pred_check
      _
    $region35: #{_pallas_forward.1} parent=1 // pred_check_branch
      %32 = sbr.rel (0) target = $region37
    $region36: #{_pallas_forward.1} parent=1 // pred_region
      %34 = vsyncadd [#allocation3], 0
      %s36 = sshll.u32 %s8, 4
      %s37 = int_to_ptr.vmem [resolvable:$true] %s36
      %39 = dma.vmem_to_smem %s37, 16, [#allocation2], [#allocation3]
    $region37: #{_pallas_forward.1} parent=1 // pred_fallthru
      _
    // Predicated region
    $region38: #{_pallas_forward.1} parent=1 // pred_check
      _
    $region39: #{_pallas_forward.1} parent=1 // pred_check_branch
      %41 = sbr.rel (0) target = $region41
    $region40: #{_pallas_forward.1} parent=1 // pred_region
      %43 = dma.done [#allocation3], 16
    $region41: #{_pallas_forward.1} parent=1 // pred_fallthru
      _
    %44 = sfence
    %v46 = vld [vmem:[%s0] sm:$0xff]
    %v47 = vld [vmem:[%s0 + $0x8] sm:$0xff]
    %v48 = vld [vmem:[%s0 + $0x10] sm:$0xff]
    %v49 = vld [vmem:[%s0 + $0x18] sm:$0xf]
    %v50 = vld [vmem:[%s0 + $0x20] sm:$0xff]
    %v51 = vld [vmem:[%s0 + $0x28] sm:$0xff]
    %v52 = vld [vmem:[%s0 + $0x30] sm:$0xff]
    %v53 = vld [vmem:[%s0 + $0x38] sm:$0xf]
    %v54 = vld [vmem:[%s0 + $0x40] sm:$0xff]
    %v55 = vld [vmem:[%s0 + $0x48] sm:$0xff]
    %v56 = vld [vmem:[%s0 + $0x50] sm:$0xff]
    %v57 = vld [vmem:[%s0 + $0x58] sm:$0xf]
    %v58 = vld [vmem:[%s0 + $0x60] sm:$0xff]
    %v59 = vld [vmem:[%s0 + $0x68] sm:$0xff]
    %v60 = vld [vmem:[%s0 + $0x70] sm:$0xff]
    %v61 = vld [vmem:[%s0 + $0x78] sm:$0xf]
    %v62 = vld [vmem:[%s0 + $0x80] sm:$0xff]
    %v63 = vld [vmem:[%s0 + $0x88] sm:$0xff]
    %v64 = vld [vmem:[%s0 + $0x90] sm:$0xff]
    %v65 = vld [vmem:[%s0 + $0x98] sm:$0xf]
    %v66 = vld [vmem:[%s0 + $0xa0] sm:$0xff]
    %v67 = vld [vmem:[%s0 + $0xa8] sm:$0xff]
    %v68 = vld [vmem:[%s0 + $0xb0] sm:$0xff]
    %v69 = vld [vmem:[%s0 + $0xb8] sm:$0xf]
    %v70 = vld [vmem:[%s0 + $0xc0] sm:$0xff]
    %v71 = vld [vmem:[%s0 + $0xc8] sm:$0xff]
    %v72 = vld [vmem:[%s0 + $0xd0] sm:$0xff]
    %v73 = vld [vmem:[%s0 + $0xd8] sm:$0xf]
    %v74 = vld [vmem:[%s0 + $0xe0] sm:$0xff]
    %v75 = vld [vmem:[%s0 + $0xe8] sm:$0xff]
    %v76 = vld [vmem:[%s0 + $0xf0] sm:$0xff]
    %v77 = vld [vmem:[%s0 + $0xf8] sm:$0xf]
    %vm110 = vcmask 1046528
    %v111 = vrot.slane %v46, 1
    %v112 = vrot.slane %v47, 1
    %v113 = vsel %vm110, %v111, %v112
    %v114 = vrot.slane %v48, 1
    %v115 = vsel %vm110, %v112, %v114
    %v116 = vrot.slane %v49, 1
    %v117 = vsel %vm110, %v114, %v116
    %v118 = vrot.slane %v50, 1
    %v119 = vrot.slane %v51, 1
    %v120 = vsel %vm110, %v118, %v119
    %v121 = vrot.slane %v52, 1
    %v122 = vsel %vm110, %v119, %v121
    %v123 = vrot.slane %v53, 1
    %v124 = vsel %vm110, %v121, %v123
    %v125 = vrot.slane %v54, 1
    %v126 = vrot.slane %v55, 1
    %v127 = vsel %vm110, %v125, %v126
    %v128 = vrot.slane %v56, 1
    %v129 = vsel %vm110, %v126, %v128
    %v130 = vrot.slane %v57, 1
    %v131 = vsel %vm110, %v128, %v130
    %v132 = vrot.slane %v58, 1
    %v133 = vrot.slane %v59, 1
    %v134 = vsel %vm110, %v132, %v133
    %v135 = vrot.slane %v60, 1
    %v136 = vsel %vm110, %v133, %v135
    %v137 = vrot.slane %v61, 1
    %v138 = vsel %vm110, %v135, %v137
    %v139 = vrot.slane %v62, 1
    %v140 = vrot.slane %v63, 1
    %v141 = vsel %vm110, %v139, %v140
    %v142 = vrot.slane %v64, 1
    %v143 = vsel %vm110, %v140, %v142
    %v144 = vrot.slane %v65, 1
    %v145 = vsel %vm110, %v142, %v144
    %v146 = vrot.slane %v66, 1
    %v147 = vrot.slane %v67, 1
    %v148 = vsel %vm110, %v146, %v147
    %v149 = vrot.slane %v68, 1
    %v150 = vsel %vm110, %v147, %v149
    %v151 = vrot.slane %v69, 1
    %v152 = vsel %vm110, %v149, %v151
    %v153 = vrot.slane %v70, 1
    %v154 = vrot.slane %v71, 1
    %v155 = vsel %vm110, %v153, %v154
    %v156 = vrot.slane %v72, 1
    %v157 = vsel %vm110, %v154, %v156
    %v158 = vrot.slane %v73, 1
    %v159 = vsel %vm110, %v156, %v158
    %v160 = vrot.slane %v74, 1
    %v161 = vrot.slane %v75, 1
    %v162 = vsel %vm110, %v160, %v161
    %v163 = vrot.slane %v76, 1
    %v164 = vsel %vm110, %v161, %v163
    %v165 = vrot.slane %v77, 1
    %v166 = vsel %vm110, %v163, %v165
    %167 = vrot.lane.b32.xlu0 %v113, 28
    %v168 = vpop.permute.xlu0 %167
    %169 = vrot.lane.b32.xlu0 %v115, 28
    %v170 = vpop.permute.xlu0 %169
    %171 = vrot.lane.b32.xlu0 %v117, 28
    %v172 = vpop.permute.xlu0 %171
    %173 = vrot.lane.b32.xlu0 %v120, 28
    %v174 = vpop.permute.xlu0 %173
    %175 = vrot.lane.b32.xlu0 %v122, 28
    %v176 = vpop.permute.xlu0 %175
    %177 = vrot.lane.b32.xlu0 %v124, 28
    %v178 = vpop.permute.xlu0 %177
    %179 = vrot.lane.b32.xlu0 %v127, 28
    %v180 = vpop.permute.xlu0 %179
    %181 = vrot.lane.b32.xlu0 %v129, 28
    %v182 = vpop.permute.xlu0 %181
    %183 = vrot.lane.b32.xlu0 %v131, 28
    %v184 = vpop.permute.xlu0 %183
    %185 = vrot.lane.b32.xlu0 %v134, 28
    %v186 = vpop.permute.xlu0 %185
    %187 = vrot.lane.b32.xlu0 %v136, 28
    %v188 = vpop.permute.xlu0 %187
    %189 = vrot.lane.b32.xlu0 %v138, 28
    %v190 = vpop.permute.xlu0 %189
    %191 = vrot.lane.b32.xlu0 %v141, 28
    %v192 = vpop.permute.xlu0 %191
    %193 = vrot.lane.b32.xlu0 %v143, 28
    %v194 = vpop.permute.xlu0 %193
    %195 = vrot.lane.b32.xlu0 %v145, 28
    %v196 = vpop.permute.xlu0 %195
    %197 = vrot.lane.b32.xlu0 %v148, 28
    %v198 = vpop.permute.xlu0 %197
    %199 = vrot.lane.b32.xlu0 %v150, 28
    %v200 = vpop.permute.xlu0 %199
    %201 = vrot.lane.b32.xlu0 %v152, 28
    %v202 = vpop.permute.xlu0 %201
    %203 = vrot.lane.b32.xlu0 %v155, 28
    %v204 = vpop.permute.xlu0 %203
    %205 = vrot.lane.b32.xlu0 %v157, 28
    %v206 = vpop.permute.xlu0 %205
    %207 = vrot.lane.b32.xlu0 %v159, 28
    %v208 = vpop.permute.xlu0 %207
    %209 = vrot.lane.b32.xlu0 %v162, 28
    %v210 = vpop.permute.xlu0 %209
    %211 = vrot.lane.b32.xlu0 %v164, 28
    %v212 = vpop.permute.xlu0 %211
    %213 = vrot.lane.b32.xlu0 %v166, 28
    %v214 = vpop.permute.xlu0 %213
    %vm239 = vcmask 1045504
    %v240 = vrot.slane %v46, 2
    %v241 = vrot.slane %v47, 2
    %v242 = vsel %vm239, %v240, %v241
    %v243 = vrot.slane %v48, 2
    %v244 = vsel %vm239, %v241, %v243
    %v245 = vrot.slane %v49, 2
    %v246 = vsel %vm239, %v243, %v245
    %v247 = vrot.slane %v50, 2
    %v248 = vrot.slane %v51, 2
    %v249 = vsel %vm239, %v247, %v248
    %v250 = vrot.slane %v52, 2
    %v251 = vsel %vm239, %v248, %v250
    %v252 = vrot.slane %v53, 2
    %v253 = vsel %vm239, %v250, %v252
    %v254 = vrot.slane %v54, 2
    %v255 = vrot.slane %v55, 2
    %v256 = vsel %vm239, %v254, %v255
    %v257 = vrot.slane %v56, 2
    %v258 = vsel %vm239, %v255, %v257
    %v259 = vrot.slane %v57, 2
    %v260 = vsel %vm239, %v257, %v259
    %v261 = vrot.slane %v58, 2
    %v262 = vrot.slane %v59, 2
    %v263 = vsel %vm239, %v261, %v262
    %v264 = vrot.slane %v60, 2
    %v265 = vsel %vm239, %v262, %v264
    %v266 = vrot.slane %v61, 2
    %v267 = vsel %vm239, %v264, %v266
    %v268 = vrot.slane %v62, 2
    %v269 = vrot.slane %v63, 2
    %v270 = vsel %vm239, %v268, %v269
    %v271 = vrot.slane %v64, 2
    %v272 = vsel %vm239, %v269, %v271
    %v273 = vrot.slane %v65, 2
    %v274 = vsel %vm239, %v271, %v273
    %v275 = vrot.slane %v66, 2
    %v276 = vrot.slane %v67, 2
    %v277 = vsel %vm239, %v275, %v276
    %v278 = vrot.slane %v68, 2
    %v279 = vsel %vm239, %v276, %v278
    %v280 = vrot.slane %v69, 2
    %v281 = vsel %vm239, %v278, %v280
    %v282 = vrot.slane %v70, 2
    %v283 = vrot.slane %v71, 2
    %v284 = vsel %vm239, %v282, %v283
    %v285 = vrot.slane %v72, 2
    %v286 = vsel %vm239, %v283, %v285
    %v287 = vrot.slane %v73, 2
    %v288 = vsel %vm239, %v285, %v287
    %v289 = vrot.slane %v74, 2
    %v290 = vrot.slane %v75, 2
    %v291 = vsel %vm239, %v289, %v290
    %v292 = vrot.slane %v76, 2
    %v293 = vsel %vm239, %v290, %v292
    %v294 = vrot.slane %v77, 2
    %v295 = vsel %vm239, %v292, %v294
    %296 = vrot.lane.b32.xlu0 %v242, 56
    %v297 = vpop.permute.xlu0 %296
    %298 = vrot.lane.b32.xlu0 %v244, 56
    %v299 = vpop.permute.xlu0 %298
    %300 = vrot.lane.b32.xlu0 %v246, 56
    %v301 = vpop.permute.xlu0 %300
    %302 = vrot.lane.b32.xlu0 %v249, 56
    %v303 = vpop.permute.xlu0 %302
    %304 = vrot.lane.b32.xlu0 %v251, 56
    %v305 = vpop.permute.xlu0 %304
    %306 = vrot.lane.b32.xlu0 %v253, 56
    %v307 = vpop.permute.xlu0 %306
    %308 = vrot.lane.b32.xlu0 %v256, 56
    %v309 = vpop.permute.xlu0 %308
    %310 = vrot.lane.b32.xlu0 %v258, 56
    %v311 = vpop.permute.xlu0 %310
    %312 = vrot.lane.b32.xlu0 %v260, 56
    %v313 = vpop.permute.xlu0 %312
    %314 = vrot.lane.b32.xlu0 %v263, 56
    %v315 = vpop.permute.xlu0 %314
    %316 = vrot.lane.b32.xlu0 %v265, 56
    %v317 = vpop.permute.xlu0 %316
    %318 = vrot.lane.b32.xlu0 %v267, 56
    %v319 = vpop.permute.xlu0 %318
    %320 = vrot.lane.b32.xlu0 %v270, 56
    %v321 = vpop.permute.xlu0 %320
    %322 = vrot.lane.b32.xlu0 %v272, 56
    %v323 = vpop.permute.xlu0 %322
    %324 = vrot.lane.b32.xlu0 %v274, 56
    %v325 = vpop.permute.xlu0 %324
    %326 = vrot.lane.b32.xlu0 %v277, 56
    %v327 = vpop.permute.xlu0 %326
    %328 = vrot.lane.b32.xlu0 %v279, 56
    %v329 = vpop.permute.xlu0 %328
    %330 = vrot.lane.b32.xlu0 %v281, 56
    %v331 = vpop.permute.xlu0 %330
    %332 = vrot.lane.b32.xlu0 %v284, 56
    %v333 = vpop.permute.xlu0 %332
    %334 = vrot.lane.b32.xlu0 %v286, 56
    %v335 = vpop.permute.xlu0 %334
    %336 = vrot.lane.b32.xlu0 %v288, 56
    %v337 = vpop.permute.xlu0 %336
    %338 = vrot.lane.b32.xlu0 %v291, 56
    %v339 = vpop.permute.xlu0 %338
    %340 = vrot.lane.b32.xlu0 %v293, 56
    %v341 = vpop.permute.xlu0 %340
    %342 = vrot.lane.b32.xlu0 %v295, 56
    %v343 = vpop.permute.xlu0 %342
    %vm368 = vcmask 1044480
    %v369 = vrot.slane %v46, 3
    %v370 = vrot.slane %v47, 3
    %v371 = vsel %vm368, %v369, %v370
    %v372 = vrot.slane %v48, 3
    %v373 = vsel %vm368, %v370, %v372
    %v374 = vrot.slane %v49, 3
    %v375 = vsel %vm368, %v372, %v374
    %v376 = vrot.slane %v50, 3
    %v377 = vrot.slane %v51, 3
    %v378 = vsel %vm368, %v376, %v377
    %v379 = vrot.slane %v52, 3
    %v380 = vsel %vm368, %v377, %v379
    %v381 = vrot.slane %v53, 3
    %v382 = vsel %vm368, %v379, %v381
    %v383 = vrot.slane %v54, 3
    %v384 = vrot.slane %v55, 3
    %v385 = vsel %vm368, %v383, %v384
    %v386 = vrot.slane %v56, 3
    %v387 = vsel %vm368, %v384, %v386
    %v388 = vrot.slane %v57, 3
    %v389 = vsel %vm368, %v386, %v388
    %v390 = vrot.slane %v58, 3
    %v391 = vrot.slane %v59, 3
    %v392 = vsel %vm368, %v390, %v391
    %v393 = vrot.slane %v60, 3
    %v394 = vsel %vm368, %v391, %v393
    %v395 = vrot.slane %v61, 3
    %v396 = vsel %vm368, %v393, %v395
    %v397 = vrot.slane %v62, 3
    %v398 = vrot.slane %v63, 3
    %v399 = vsel %vm368, %v397, %v398
    %v400 = vrot.slane %v64, 3
    %v401 = vsel %vm368, %v398, %v400
    %v402 = vrot.slane %v65, 3
    %v403 = vsel %vm368, %v400, %v402
    %v404 = vrot.slane %v66, 3
    %v405 = vrot.slane %v67, 3
    %v406 = vsel %vm368, %v404, %v405
    %v407 = vrot.slane %v68, 3
    %v408 = vsel %vm368, %v405, %v407
    %v409 = vrot.slane %v69, 3
    %v410 = vsel %vm368, %v407, %v409
    %v411 = vrot.slane %v70, 3
    %v412 = vrot.slane %v71, 3
    %v413 = vsel %vm368, %v411, %v412
    %v414 = vrot.slane %v72, 3
    %v415 = vsel %vm368, %v412, %v414
    %v416 = vrot.slane %v73, 3
    %v417 = vsel %vm368, %v414, %v416
    %v418 = vrot.slane %v74, 3
    %v419 = vrot.slane %v75, 3
    %v420 = vsel %vm368, %v418, %v419
    %v421 = vrot.slane %v76, 3
    %v422 = vsel %vm368, %v419, %v421
    %v423 = vrot.slane %v77, 3
    %v424 = vsel %vm368, %v421, %v423
    %425 = vrot.lane.b32.xlu0 %v371, 84
    %v426 = vpop.permute.xlu0 %425
    %427 = vrot.lane.b32.xlu0 %v373, 84
    %v428 = vpop.permute.xlu0 %427
    %429 = vrot.lane.b32.xlu0 %v375, 84
    %v430 = vpop.permute.xlu0 %429
    %431 = vrot.lane.b32.xlu0 %v378, 84
    %v432 = vpop.permute.xlu0 %431
    %433 = vrot.lane.b32.xlu0 %v380, 84
    %v434 = vpop.permute.xlu0 %433
    %435 = vrot.lane.b32.xlu0 %v382, 84
    %v436 = vpop.permute.xlu0 %435
    %437 = vrot.lane.b32.xlu0 %v385, 84
    %v438 = vpop.permute.xlu0 %437
    %439 = vrot.lane.b32.xlu0 %v387, 84
    %v440 = vpop.permute.xlu0 %439
    %441 = vrot.lane.b32.xlu0 %v389, 84
    %v442 = vpop.permute.xlu0 %441
    %443 = vrot.lane.b32.xlu0 %v392, 84
    %v444 = vpop.permute.xlu0 %443
    %445 = vrot.lane.b32.xlu0 %v394, 84
    %v446 = vpop.permute.xlu0 %445
    %447 = vrot.lane.b32.xlu0 %v396, 84
    %v448 = vpop.permute.xlu0 %447
    %449 = vrot.lane.b32.xlu0 %v399, 84
    %v450 = vpop.permute.xlu0 %449
    %451 = vrot.lane.b32.xlu0 %v401, 84
    %v452 = vpop.permute.xlu0 %451
    %453 = vrot.lane.b32.xlu0 %v403, 84
    %v454 = vpop.permute.xlu0 %453
    %455 = vrot.lane.b32.xlu0 %v406, 84
    %v456 = vpop.permute.xlu0 %455
    %457 = vrot.lane.b32.xlu0 %v408, 84
    %v458 = vpop.permute.xlu0 %457
    %459 = vrot.lane.b32.xlu0 %v410, 84
    %v460 = vpop.permute.xlu0 %459
    %461 = vrot.lane.b32.xlu0 %v413, 84
    %v462 = vpop.permute.xlu0 %461
    %463 = vrot.lane.b32.xlu0 %v415, 84
    %v464 = vpop.permute.xlu0 %463
    %465 = vrot.lane.b32.xlu0 %v417, 84
    %v466 = vpop.permute.xlu0 %465
    %467 = vrot.lane.b32.xlu0 %v420, 84
    %v468 = vpop.permute.xlu0 %467
    %469 = vrot.lane.b32.xlu0 %v422, 84
    %v470 = vpop.permute.xlu0 %469
    %471 = vrot.lane.b32.xlu0 %v424, 84
    %v472 = vpop.permute.xlu0 %471
    %vm497 = vcmask 1043456
    %v498 = vrot.slane %v46, 4
    %v499 = vrot.slane %v47, 4
    %v500 = vsel %vm497, %v498, %v499
    %v501 = vrot.slane %v48, 4
    %v502 = vsel %vm497, %v499, %v501
    %v503 = vrot.slane %v49, 4
    %v504 = vsel %vm497, %v501, %v503
    %v505 = vrot.slane %v50, 4
    %v506 = vrot.slane %v51, 4
    %v507 = vsel %vm497, %v505, %v506
    %v508 = vrot.slane %v52, 4
    %v509 = vsel %vm497, %v506, %v508
    %v510 = vrot.slane %v53, 4
    %v511 = vsel %vm497, %v508, %v510
    %v512 = vrot.slane %v54, 4
    %v513 = vrot.slane %v55, 4
    %v514 = vsel %vm497, %v512, %v513
    %v515 = vrot.slane %v56, 4
    %v516 = vsel %vm497, %v513, %v515
    %v517 = vrot.slane %v57, 4
    %v518 = vsel %vm497, %v515, %v517
    %v519 = vrot.slane %v58, 4
    %v520 = vrot.slane %v59, 4
    %v521 = vsel %vm497, %v519, %v520
    %v522 = vrot.slane %v60, 4
    %v523 = vsel %vm497, %v520, %v522
    %v524 = vrot.slane %v61, 4
    %v525 = vsel %vm497, %v522, %v524
    %v526 = vrot.slane %v62, 4
    %v527 = vrot.slane %v63, 4
    %v528 = vsel %vm497, %v526, %v527
    %v529 = vrot.slane %v64, 4
    %v530 = vsel %vm497, %v527, %v529
    %v531 = vrot.slane %v65, 4
    %v532 = vsel %vm497, %v529, %v531
    %v533 = vrot.slane %v66, 4
    %v534 = vrot.slane %v67, 4
    %v535 = vsel %vm497, %v533, %v534
    %v536 = vrot.slane %v68, 4
    %v537 = vsel %vm497, %v534, %v536
    %v538 = vrot.slane %v69, 4
    %v539 = vsel %vm497, %v536, %v538
    %v540 = vrot.slane %v70, 4
    %v541 = vrot.slane %v71, 4
    %v542 = vsel %vm497, %v540, %v541
    %v543 = vrot.slane %v72, 4
    %v544 = vsel %vm497, %v541, %v543
    %v545 = vrot.slane %v73, 4
    %v546 = vsel %vm497, %v543, %v545
    %v547 = vrot.slane %v74, 4
    %v548 = vrot.slane %v75, 4
    %v549 = vsel %vm497, %v547, %v548
    %v550 = vrot.slane %v76, 4
    %v551 = vsel %vm497, %v548, %v550
    %v552 = vrot.slane %v77, 4
    %v553 = vsel %vm497, %v550, %v552
    %554 = vrot.lane.b32.xlu0 %v500, 112
    %v555 = vpop.permute.xlu0 %554
    %556 = vrot.lane.b32.xlu0 %v502, 112
    %v557 = vpop.permute.xlu0 %556
    %558 = vrot.lane.b32.xlu0 %v504, 112
    %v559 = vpop.permute.xlu0 %558
    %560 = vrot.lane.b32.xlu0 %v507, 112
    %v561 = vpop.permute.xlu0 %560
    %562 = vrot.lane.b32.xlu0 %v509, 112
    %v563 = vpop.permute.xlu0 %562
    %564 = vrot.lane.b32.xlu0 %v511, 112
    %v565 = vpop.permute.xlu0 %564
    %566 = vrot.lane.b32.xlu0 %v514, 112
    %v567 = vpop.permute.xlu0 %566
    %568 = vrot.lane.b32.xlu0 %v516, 112
    %v569 = vpop.permute.xlu0 %568
    %570 = vrot.lane.b32.xlu0 %v518, 112
    %v571 = vpop.permute.xlu0 %570
    %572 = vrot.lane.b32.xlu0 %v521, 112
    %v573 = vpop.permute.xlu0 %572
    %574 = vrot.lane.b32.xlu0 %v523, 112
    %v575 = vpop.permute.xlu0 %574
    %576 = vrot.lane.b32.xlu0 %v525, 112
    %v577 = vpop.permute.xlu0 %576
    %578 = vrot.lane.b32.xlu0 %v528, 112
    %v579 = vpop.permute.xlu0 %578
    %580 = vrot.lane.b32.xlu0 %v530, 112
    %v581 = vpop.permute.xlu0 %580
    %582 = vrot.lane.b32.xlu0 %v532, 112
    %v583 = vpop.permute.xlu0 %582
    %584 = vrot.lane.b32.xlu0 %v535, 112
    %v585 = vpop.permute.xlu0 %584
    %586 = vrot.lane.b32.xlu0 %v537, 112
    %v587 = vpop.permute.xlu0 %586
    %588 = vrot.lane.b32.xlu0 %v539, 112
    %v589 = vpop.permute.xlu0 %588
    %590 = vrot.lane.b32.xlu0 %v542, 112
    %v591 = vpop.permute.xlu0 %590
    %592 = vrot.lane.b32.xlu0 %v544, 112
    %v593 = vpop.permute.xlu0 %592
    %594 = vrot.lane.b32.xlu0 %v546, 112
    %v595 = vpop.permute.xlu0 %594
    %596 = vrot.lane.b32.xlu0 %v549, 112
    %v597 = vpop.permute.xlu0 %596
    %598 = vrot.lane.b32.xlu0 %v551, 112
    %v599 = vpop.permute.xlu0 %598
    %600 = vrot.lane.b32.xlu0 %v553, 112
    %v601 = vpop.permute.xlu0 %600
    %vm626 = vcmask 228352
    %v627 = vsel %vm626, %v46, %v168
    %v628 = vsel %vm626, %v47, %v170
    %v629 = vsel %vm626, %v48, %v172
    %v630 = vsel %vm626, %v50, %v174
    %v631 = vsel %vm626, %v51, %v176
    %v632 = vsel %vm626, %v52, %v178
    %v633 = vsel %vm626, %v54, %v180
    %v634 = vsel %vm626, %v55, %v182
    %v635 = vsel %vm626, %v56, %v184
    %v636 = vsel %vm626, %v58, %v186
    %v637 = vsel %vm626, %v59, %v188
    %v638 = vsel %vm626, %v60, %v190
    %v639 = vsel %vm626, %v62, %v192
    %v640 = vsel %vm626, %v63, %v194
    %v641 = vsel %vm626, %v64, %v196
    %v642 = vsel %vm626, %v66, %v198
    %v643 = vsel %vm626, %v67, %v200
    %v644 = vsel %vm626, %v68, %v202
    %v645 = vsel %vm626, %v70, %v204
    %v646 = vsel %vm626, %v71, %v206
    %v647 = vsel %vm626, %v72, %v208
    %v648 = vsel %vm626, %v74, %v210
    %v649 = vsel %vm626, %v75, %v212
    %v650 = vsel %vm626, %v76, %v214
    %vm651 = vcmask 457728
    %v652 = vsel %vm651, %v627, %v297
    %v653 = vsel %vm651, %v628, %v299
    %v654 = vsel %vm651, %v629, %v301
    %v655 = vsel %vm651, %v630, %v303
    %v656 = vsel %vm651, %v631, %v305
    %v657 = vsel %vm651, %v632, %v307
    %v658 = vsel %vm651, %v633, %v309
    %v659 = vsel %vm651, %v634, %v311
    %v660 = vsel %vm651, %v635, %v313
    %v661 = vsel %vm651, %v636, %v315
    %v662 = vsel %vm651, %v637, %v317
    %v663 = vsel %vm651, %v638, %v319
    %v664 = vsel %vm651, %v639, %v321
    %v665 = vsel %vm651, %v640, %v323
    %v666 = vsel %vm651, %v641, %v325
    %v667 = vsel %vm651, %v642, %v327
    %v668 = vsel %vm651, %v643, %v329
    %v669 = vsel %vm651, %v644, %v331
    %v670 = vsel %vm651, %v645, %v333
    %v671 = vsel %vm651, %v646, %v335
    %v672 = vsel %vm651, %v647, %v337
    %v673 = vsel %vm651, %v648, %v339
    %v674 = vsel %vm651, %v649, %v341
    %v675 = vsel %vm651, %v650, %v343
    %vm676 = vcmask 687104
    %v677 = vsel %vm676, %v652, %v426
    %v678 = vsel %vm676, %v653, %v428
    %v679 = vsel %vm676, %v654, %v430
    %v680 = vsel %vm676, %v655, %v432
    %v681 = vsel %vm676, %v656, %v434
    %v682 = vsel %vm676, %v657, %v436
    %v683 = vsel %vm676, %v658, %v438
    %v684 = vsel %vm676, %v659, %v440
    %v685 = vsel %vm676, %v660, %v442
    %v686 = vsel %vm676, %v661, %v444
    %v687 = vsel %vm676, %v662, %v446
    %v688 = vsel %vm676, %v663, %v448
    %v689 = vsel %vm676, %v664, %v450
    %v690 = vsel %vm676, %v665, %v452
    %v691 = vsel %vm676, %v666, %v454
    %v692 = vsel %vm676, %v667, %v456
    %v693 = vsel %vm676, %v668, %v458
    %v694 = vsel %vm676, %v669, %v460
    %v695 = vsel %vm676, %v670, %v462
    %v696 = vsel %vm676, %v671, %v464
    %v697 = vsel %vm676, %v672, %v466
    %v698 = vsel %vm676, %v673, %v468
    %v699 = vsel %vm676, %v674, %v470
    %v700 = vsel %vm676, %v675, %v472
    %vm701 = vcmask 916480
    %v702 = vsel %vm701, %v677, %v555
    %v703 = vsel %vm701, %v678, %v557
    %v704 = vsel %vm701, %v679, %v559
    %v705 = vsel %vm701, %v680, %v561
    %v706 = vsel %vm701, %v681, %v563
    %v707 = vsel %vm701, %v682, %v565
    %v708 = vsel %vm701, %v683, %v567
    %v709 = vsel %vm701, %v684, %v569
    %v710 = vsel %vm701, %v685, %v571
    %v711 = vsel %vm701, %v686, %v573
    %v712 = vsel %vm701, %v687, %v575
    %v713 = vsel %vm701, %v688, %v577
    %v714 = vsel %vm701, %v689, %v579
    %v715 = vsel %vm701, %v690, %v581
    %v716 = vsel %vm701, %v691, %v583
    %v717 = vsel %vm701, %v692, %v585
    %v718 = vsel %vm701, %v693, %v587
    %v719 = vsel %vm701, %v694, %v589
    %v720 = vsel %vm701, %v695, %v591
    %v721 = vsel %vm701, %v696, %v593
    %v722 = vsel %vm701, %v697, %v595
    %v723 = vsel %vm701, %v698, %v597
    %v724 = vsel %vm701, %v699, %v599
    %v725 = vsel %vm701, %v700, %v601
    %v726 = vpack.c.bf16 %v703, %v702
    %v727 = vpack.c.bf16 %v557, %v555
    %v728 = vpack.c.bf16 %v705, %v704
    %v729 = vpack.c.bf16 %v561, %v559
    %v730 = vpack.c.bf16 %v707, %v706
    %v731 = vpack.c.bf16 %v565, %v563
    %v732 = vpack.c.bf16 %v709, %v708
    %v733 = vpack.c.bf16 %v569, %v567
    %v734 = vpack.c.bf16 %v711, %v710
    %v735 = vpack.c.bf16 %v573, %v571
    %v736 = vpack.c.bf16 %v713, %v712
    %v737 = vpack.c.bf16 %v577, %v575
    %v738 = vpack.c.bf16 %v715, %v714
    %v739 = vpack.c.bf16 %v581, %v579
    %v740 = vpack.c.bf16 %v717, %v716
    %v741 = vpack.c.bf16 %v585, %v583
    %v742 = vpack.c.bf16 %v719, %v718
    %v743 = vpack.c.bf16 %v589, %v587
    %v744 = vpack.c.bf16 %v721, %v720
    %v745 = vpack.c.bf16 %v593, %v591
    %v746 = vpack.c.bf16 %v723, %v722
    %v747 = vpack.c.bf16 %v597, %v595
    %v748 = vpack.c.bf16 %v725, %v724
    %v749 = vpack.c.bf16 %v601, %v599
    %v750 = vld [vmem:[%s1] sm:$0xf]
    %v751 = vld [vmem:[%s1 + $0x4] sm:$0xf]
    %v752 = vld [vmem:[%s1 + $0x8] sm:$0xf]
    %v753 = vld [vmem:[%s1 + $0xc] sm:$0xf]
    %v754 = vld [vmem:[%s1 + $0x10] sm:$0xf]
    %v755 = vld [vmem:[%s1 + $0x14] sm:$0xf]
    %v756 = vld [vmem:[%s1 + $0x18] sm:$0xf]
    %v757 = vld [vmem:[%s1 + $0x1c] sm:$0xf]
    %v758 = vld [vmem:[%s1 + $0x20] sm:$0xf]
    %v759 = vld [vmem:[%s1 + $0x24] sm:$0xf]
    %v760 = vld [vmem:[%s1 + $0x28] sm:$0xf]
    %v761 = vld [vmem:[%s1 + $0x2c] sm:$0xf]
    %v762 = vld [vmem:[%s1 + $0x30] sm:$0xf]
    %v763 = vld [vmem:[%s1 + $0x34] sm:$0xf]
    %v764 = vld [vmem:[%s1 + $0x38] sm:$0xf]
    %v765 = vld [vmem:[%s1 + $0x3c] sm:$0xf]
    %v766 = vld [vmem:[%s1 + $0x40] sm:$0xf]
    %v767 = vld [vmem:[%s1 + $0x44] sm:$0x3]
    %v786 = vunpack.c.l.b16 %v750
    %v787 = vunpack.c.l.b16 %v751
    %v788 = vunpack.c.l.b16 %v752
    %v789 = vunpack.c.l.b16 %v753
    %v790 = vunpack.c.l.b16 %v754
    %v791 = vunpack.c.l.b16 %v755
    %v792 = vunpack.c.l.b16 %v756
    %v793 = vunpack.c.l.b16 %v757
    %v794 = vunpack.c.l.b16 %v758
    %v795 = vunpack.c.l.b16 %v759
    %v796 = vunpack.c.l.b16 %v760
    %v797 = vunpack.c.l.b16 %v761
    %v798 = vunpack.c.l.b16 %v762
    %v799 = vunpack.c.l.b16 %v763
    %v800 = vunpack.c.l.b16 %v764
    %v801 = vunpack.c.l.b16 %v765
    %v802 = vunpack.c.l.b16 %v766
    %v803 = vunpack.c.l.b16 %v767
    %v804 = vpack.c.b16 %v787, %v786
    %v805 = vpack.c.b16 %v789, %v788
    %v806 = vpack.c.b16 %v791, %v790
    %v807 = vpack.c.b16 %v793, %v792
    %v808 = vpack.c.b16 %v795, %v794
    %v809 = vpack.c.b16 %v797, %v796
    %v810 = vpack.c.b16 %v799, %v798
    %v811 = vpack.c.b16 %v801, %v800
    %v812 = vpack.c.b16 %v803, %v802
    %vm821 = vcmask 97280
    %v823 = vsel %vm821, %v727, 0
    %v826 = vsel %vm821, %v729, 0
    %v829 = vsel %vm821, %v731, 0
    %v832 = vsel %vm821, %v733, 0
    %v835 = vsel %vm821, %v735, 0
    %v838 = vsel %vm821, %v737, 0
    %v841 = vsel %vm821, %v739, 0
    %v844 = vsel %vm821, %v741, 0
    %v847 = vsel %vm821, %v743, 0
    %v850 = vsel %vm821, %v745, 0
    %v853 = vsel %vm821, %v747, 0
    %v856 = vsel %vm821, %v749, 0
    %v859 = vsel %vm239, %v812, 0
    %861 = vmatpush.bf16.msra.mxu0 %v811
    %862 = vmatpush.bf16.msra.mxu0 %v810
    %863 = vmatpush.bf16.msra.mxu0 %v809
    %864 = vmatpush.bf16.msra.mxu0 %v808
    %865 = vmatpush.bf16.msra.mxu0 %v807
    %866 = vmatpush.bf16.msra.mxu0 %v806
    %867 = vmatpush.bf16.msra.mxu0 %v805
    %868 = vmatpush.bf16.msra.mxu0 %v804
    %869 = vmatmul.bf16.gmra.mxu0 %v726
    %v870 = vpop.f32.mrf.mxu0
    %v871 = vadd.f32 0.0, %v870
    %v872 = vpop.f32.mrf.mxu0
    %v873 = vadd.f32 0.0, %v872
    %874 = vmatmul.bf16.gmra.mxu0 %v728
    %v875 = vpop.f32.mrf.mxu0
    %v876 = vadd.f32 0.0, %v875
    %v877 = vpop.f32.mrf.mxu0
    %v878 = vadd.f32 0.0, %v877
    %879 = vmatmul.bf16.gmra.mxu0 %v730
    %v880 = vpop.f32.mrf.mxu0
    %v881 = vadd.f32 0.0, %v880
    %v882 = vpop.f32.mrf.mxu0
    %v883 = vadd.f32 0.0, %v882
    %884 = vmatmul.bf16.gmra.mxu0 %v732
    %v885 = vpop.f32.mrf.mxu0
    %v886 = vadd.f32 0.0, %v885
    %v887 = vpop.f32.mrf.mxu0
    %v888 = vadd.f32 0.0, %v887
    %889 = vmatmul.bf16.gmra.mxu0 %v734
    %v890 = vpop.f32.mrf.mxu0
    %v891 = vadd.f32 0.0, %v890
    %v892 = vpop.f32.mrf.mxu0
    %v893 = vadd.f32 0.0, %v892
    %894 = vmatmul.bf16.gmra.mxu0 %v736
    %v895 = vpop.f32.mrf.mxu0
    %v896 = vadd.f32 0.0, %v895
    %v897 = vpop.f32.mrf.mxu0
    %v898 = vadd.f32 0.0, %v897
    %899 = vmatmul.bf16.gmra.mxu0 %v738
    %v900 = vpop.f32.mrf.mxu0
    %v901 = vadd.f32 0.0, %v900
    %v902 = vpop.f32.mrf.mxu0
    %v903 = vadd.f32 0.0, %v902
    %904 = vmatmul.bf16.gmra.mxu0 %v740
    %v905 = vpop.f32.mrf.mxu0
    %v906 = vadd.f32 0.0, %v905
    %v907 = vpop.f32.mrf.mxu0
    %v908 = vadd.f32 0.0, %v907
    %909 = vmatmul.bf16.gmra.mxu0 %v742
    %v910 = vpop.f32.mrf.mxu0
    %v911 = vadd.f32 0.0, %v910
    %v912 = vpop.f32.mrf.mxu0
    %v913 = vadd.f32 0.0, %v912
    %914 = vmatmul.bf16.gmra.mxu0 %v744
    %v915 = vpop.f32.mrf.mxu0
    %v916 = vadd.f32 0.0, %v915
    %v917 = vpop.f32.mrf.mxu0
    %v918 = vadd.f32 0.0, %v917
    %919 = vmatmul.bf16.gmra.mxu0 %v746
    %v920 = vpop.f32.mrf.mxu0
    %v921 = vadd.f32 0.0, %v920
    %v922 = vpop.f32.mrf.mxu0
    %v923 = vadd.f32 0.0, %v922
    %924 = vmatmul.bf16.gmra.mxu0 %v748
    %v925 = vpop.f32.mrf.mxu0
    %v926 = vadd.f32 0.0, %v925
    %v927 = vpop.f32.mrf.mxu0
    %v928 = vadd.f32 0.0, %v927
    %929 = vdwg.mxu0
    %930 = vmatpush.bf16.msra.mxu0 0
    %931 = vmatpush.bf16.msra.mxu0 0
    %932 = vmatpush.bf16.msra.mxu0 0
    %933 = vmatpush.bf16.msra.mxu0 0
    %934 = vmatpush.bf16.msra.mxu0 0
    %935 = vmatpush.bf16.msra.mxu0 0
    %936 = vmatpush.bf16.msra.mxu0 0
    %937 = vmatpush.bf16.msra.mxu0 %v859
    %938 = vmatmul.bf16.gmra.mxu0 %v823
    %v939 = vpop.f32.mrf.mxu0
    %v940 = vadd.f32 %v871, %v939
    %v941 = vpop.f32.mrf.mxu0
    %v942 = vadd.f32 %v873, %v941
    %943 = vmatmul.bf16.gmra.mxu0 %v826
    %v944 = vpop.f32.mrf.mxu0
    %v945 = vadd.f32 %v876, %v944
    %v946 = vpop.f32.mrf.mxu0
    %v947 = vadd.f32 %v878, %v946
    %948 = vmatmul.bf16.gmra.mxu0 %v829
    %v949 = vpop.f32.mrf.mxu0
    %v950 = vadd.f32 %v881, %v949
    %v951 = vpop.f32.mrf.mxu0
    %v952 = vadd.f32 %v883, %v951
    %953 = vmatmul.bf16.gmra.mxu0 %v832
    %v954 = vpop.f32.mrf.mxu0
    %v955 = vadd.f32 %v886, %v954
    %v956 = vpop.f32.mrf.mxu0
    %v957 = vadd.f32 %v888, %v956
    %958 = vmatmul.bf16.gmra.mxu0 %v835
    %v959 = vpop.f32.mrf.mxu0
    %v960 = vadd.f32 %v891, %v959
    %v961 = vpop.f32.mrf.mxu0
    %v962 = vadd.f32 %v893, %v961
    %963 = vmatmul.bf16.gmra.mxu0 %v838
    %v964 = vpop.f32.mrf.mxu0
    %v965 = vadd.f32 %v896, %v964
    %v966 = vpop.f32.mrf.mxu0
    %v967 = vadd.f32 %v898, %v966
    %968 = vmatmul.bf16.gmra.mxu0 %v841
    %v969 = vpop.f32.mrf.mxu0
    %v970 = vadd.f32 %v901, %v969
    %v971 = vpop.f32.mrf.mxu0
    %v972 = vadd.f32 %v903, %v971
    %973 = vmatmul.bf16.gmra.mxu0 %v844
    %v974 = vpop.f32.mrf.mxu0
    %v975 = vadd.f32 %v906, %v974
    %v976 = vpop.f32.mrf.mxu0
    %v977 = vadd.f32 %v908, %v976
    %978 = vmatmul.bf16.gmra.mxu0 %v847
    %v979 = vpop.f32.mrf.mxu0
    %v980 = vadd.f32 %v911, %v979
    %v981 = vpop.f32.mrf.mxu0
    %v982 = vadd.f32 %v913, %v981
    %983 = vmatmul.bf16.gmra.mxu0 %v850
    %v984 = vpop.f32.mrf.mxu0
    %v985 = vadd.f32 %v916, %v984
    %v986 = vpop.f32.mrf.mxu0
    %v987 = vadd.f32 %v918, %v986
    %988 = vmatmul.bf16.gmra.mxu0 %v853
    %v989 = vpop.f32.mrf.mxu0
    %v990 = vadd.f32 %v921, %v989
    %v991 = vpop.f32.mrf.mxu0
    %v992 = vadd.f32 %v923, %v991
    %993 = vmatmul.bf16.gmra.mxu0 %v856
    %v994 = vpop.f32.mrf.mxu0
    %v995 = vadd.f32 %v926, %v994
    %v996 = vpop.f32.mrf.mxu0
    %v997 = vadd.f32 %v928, %v996
    %998 = vdwg.mxu0
    %v999 = vld [vmem:[%s2] sm:$0x1]
    %v1001 = vperm.slane %v999, 0
    %v1003 = vadd.f32 %v940, %v1001
    %v1004 = vadd.f32 %v942, %v1001
    %v1005 = vadd.f32 %v945, %v1001
    %v1006 = vadd.f32 %v947, %v1001
    %v1007 = vadd.f32 %v950, %v1001
    %v1008 = vadd.f32 %v952, %v1001
    %v1009 = vadd.f32 %v955, %v1001
    %v1010 = vadd.f32 %v957, %v1001
    %v1011 = vadd.f32 %v960, %v1001
    %v1012 = vadd.f32 %v962, %v1001
    %v1013 = vadd.f32 %v965, %v1001
    %v1014 = vadd.f32 %v967, %v1001
    %v1015 = vadd.f32 %v970, %v1001
    %v1016 = vadd.f32 %v972, %v1001
    %v1017 = vadd.f32 %v975, %v1001
    %v1018 = vadd.f32 %v977, %v1001
    %v1019 = vadd.f32 %v980, %v1001
    %v1020 = vadd.f32 %v982, %v1001
    %v1021 = vadd.f32 %v985, %v1001
    %v1022 = vadd.f32 %v987, %v1001
    %v1023 = vadd.f32 %v990, %v1001
    %v1024 = vadd.f32 %v992, %v1001
    %v1025 = vadd.f32 %v995, %v1001
    %v1026 = vadd.f32 %v997, %v1001
    %v1027 = vmax.f32 %v1003, 0.0
    %v1028 = vmax.f32 %v1004, 0.0
    %v1029 = vmax.f32 %v1005, 0.0
    %v1030 = vmax.f32 %v1006, 0.0
    %v1031 = vmax.f32 %v1007, 0.0
    %v1032 = vmax.f32 %v1008, 0.0
    %v1033 = vmax.f32 %v1009, 0.0
    %v1034 = vmax.f32 %v1010, 0.0
    %v1035 = vmax.f32 %v1011, 0.0
    %v1036 = vmax.f32 %v1012, 0.0
    %v1037 = vmax.f32 %v1013, 0.0
    %v1038 = vmax.f32 %v1014, 0.0
    %v1039 = vmax.f32 %v1015, 0.0
    %v1040 = vmax.f32 %v1016, 0.0
    %v1041 = vmax.f32 %v1017, 0.0
    %v1042 = vmax.f32 %v1018, 0.0
    %v1043 = vmax.f32 %v1019, 0.0
    %v1044 = vmax.f32 %v1020, 0.0
    %v1045 = vmax.f32 %v1021, 0.0
    %v1046 = vmax.f32 %v1022, 0.0
    %v1047 = vmax.f32 %v1023, 0.0
    %v1048 = vmax.f32 %v1024, 0.0
    %v1049 = vmax.f32 %v1025, 0.0
    %v1050 = vmax.f32 %v1026, 0.0
    %v1075 = vrot.slane %v1027, 1
    %v1076 = vrot.slane %v1028, 1
    %v1077 = vsel %vm110, %v1075, %v1076
    %v1078 = vrot.slane %v1029, 1
    %v1079 = vsel %vm110, %v1076, %v1078
    %v1080 = vrot.slane %v1030, 1
    %v1081 = vrot.slane %v1031, 1
    %v1082 = vsel %vm110, %v1080, %v1081
    %v1083 = vrot.slane %v1032, 1
    %v1084 = vsel %vm110, %v1081, %v1083
    %v1085 = vrot.slane %v1033, 1
    %v1086 = vrot.slane %v1034, 1
    %v1087 = vsel %vm110, %v1085, %v1086
    %v1088 = vrot.slane %v1035, 1
    %v1089 = vsel %vm110, %v1086, %v1088
    %v1090 = vrot.slane %v1036, 1
    %v1091 = vrot.slane %v1037, 1
    %v1092 = vsel %vm110, %v1090, %v1091
    %v1093 = vrot.slane %v1038, 1
    %v1094 = vsel %vm110, %v1091, %v1093
    %v1095 = vrot.slane %v1039, 1
    %v1096 = vrot.slane %v1040, 1
    %v1097 = vsel %vm110, %v1095, %v1096
    %v1098 = vrot.slane %v1041, 1
    %v1099 = vsel %vm110, %v1096, %v1098
    %v1100 = vrot.slane %v1042, 1
    %v1101 = vrot.slane %v1043, 1
    %v1102 = vsel %vm110, %v1100, %v1101
    %v1103 = vrot.slane %v1044, 1
    %v1104 = vsel %vm110, %v1101, %v1103
    %v1105 = vrot.slane %v1045, 1
    %v1106 = vrot.slane %v1046, 1
    %v1107 = vsel %vm110, %v1105, %v1106
    %v1108 = vrot.slane %v1047, 1
    %v1109 = vsel %vm110, %v1106, %v1108
    %v1110 = vrot.slane %v1048, 1
    %v1111 = vrot.slane %v1049, 1
    %v1112 = vsel %vm110, %v1110, %v1111
    %v1113 = vrot.slane %v1050, 1
    %v1114 = vsel %vm110, %v1111, %v1113
    %v1139 = vmax.f32 %v1027, %v1077
    %v1140 = vmax.f32 %v1028, %v1079
    %v1141 = vmax.f32 %v1029, %v1078
    %v1142 = vmax.f32 %v1030, %v1082
    %v1143 = vmax.f32 %v1031, %v1084
    %v1144 = vmax.f32 %v1032, %v1083
    %v1145 = vmax.f32 %v1033, %v1087
    %v1146 = vmax.f32 %v1034, %v1089
    %v1147 = vmax.f32 %v1035, %v1088
    %v1148 = vmax.f32 %v1036, %v1092
    %v1149 = vmax.f32 %v1037, %v1094
    %v1150 = vmax.f32 %v1038, %v1093
    %v1151 = vmax.f32 %v1039, %v1097
    %v1152 = vmax.f32 %v1040, %v1099
    %v1153 = vmax.f32 %v1041, %v1098
    %v1154 = vmax.f32 %v1042, %v1102
    %v1155 = vmax.f32 %v1043, %v1104
    %v1156 = vmax.f32 %v1044, %v1103
    %v1157 = vmax.f32 %v1045, %v1107
    %v1158 = vmax.f32 %v1046, %v1109
    %v1159 = vmax.f32 %v1047, %v1108
    %v1160 = vmax.f32 %v1048, %v1112
    %v1161 = vmax.f32 %v1049, %v1114
    %v1162 = vmax.f32 %v1050, %v1113
    %1187 = vrot.lane.b32.xlu0 %v1139, 127
    %v1188 = vpop.permute.xlu0 %1187
    %1189 = vrot.lane.b32.xlu0 %v1140, 127
    %v1190 = vpop.permute.xlu0 %1189
    %1191 = vrot.lane.b32.xlu0 %v1141, 127
    %v1192 = vpop.permute.xlu0 %1191
    %1193 = vrot.lane.b32.xlu0 %v1142, 127
    %v1194 = vpop.permute.xlu0 %1193
    %1195 = vrot.lane.b32.xlu0 %v1143, 127
    %v1196 = vpop.permute.xlu0 %1195
    %1197 = vrot.lane.b32.xlu0 %v1144, 127
    %v1198 = vpop.permute.xlu0 %1197
    %1199 = vrot.lane.b32.xlu0 %v1145, 127
    %v1200 = vpop.permute.xlu0 %1199
    %1201 = vrot.lane.b32.xlu0 %v1146, 127
    %v1202 = vpop.permute.xlu0 %1201
    %1203 = vrot.lane.b32.xlu0 %v1147, 127
    %v1204 = vpop.permute.xlu0 %1203
    %1205 = vrot.lane.b32.xlu0 %v1148, 127
    %v1206 = vpop.permute.xlu0 %1205
    %1207 = vrot.lane.b32.xlu0 %v1149, 127
    %v1208 = vpop.permute.xlu0 %1207
    %1209 = vrot.lane.b32.xlu0 %v1150, 127
    %v1210 = vpop.permute.xlu0 %1209
    %1211 = vrot.lane.b32.xlu0 %v1151, 127
    %v1212 = vpop.permute.xlu0 %1211
    %1213 = vrot.lane.b32.xlu0 %v1152, 127
    %v1214 = vpop.permute.xlu0 %1213
    %1215 = vrot.lane.b32.xlu0 %v1153, 127
    %v1216 = vpop.permute.xlu0 %1215
    %1217 = vrot.lane.b32.xlu0 %v1154, 127
    %v1218 = vpop.permute.xlu0 %1217
    %1219 = vrot.lane.b32.xlu0 %v1155, 127
    %v1220 = vpop.permute.xlu0 %1219
    %1221 = vrot.lane.b32.xlu0 %v1156, 127
    %v1222 = vpop.permute.xlu0 %1221
    %1223 = vrot.lane.b32.xlu0 %v1157, 127
    %v1224 = vpop.permute.xlu0 %1223
    %1225 = vrot.lane.b32.xlu0 %v1158, 127
    %v1226 = vpop.permute.xlu0 %1225
    %1227 = vrot.lane.b32.xlu0 %v1159, 127
    %v1228 = vpop.permute.xlu0 %1227
    %1229 = vrot.lane.b32.xlu0 %v1160, 127
    %v1230 = vpop.permute.xlu0 %1229
    %1231 = vrot.lane.b32.xlu0 %v1161, 127
    %v1232 = vpop.permute.xlu0 %1231
    %1233 = vrot.lane.b32.xlu0 %v1162, 127
    %v1234 = vpop.permute.xlu0 %1233
    %v1259 = vmax.f32 %v1139, %v1188
    %v1260 = vmax.f32 %v1140, %v1190
    %v1261 = vmax.f32 %v1141, %v1192
    %v1262 = vmax.f32 %v1142, %v1194
    %v1263 = vmax.f32 %v1143, %v1196
    %v1264 = vmax.f32 %v1144, %v1198
    %v1265 = vmax.f32 %v1145, %v1200
    %v1266 = vmax.f32 %v1146, %v1202
    %v1267 = vmax.f32 %v1147, %v1204
    %v1268 = vmax.f32 %v1148, %v1206
    %v1269 = vmax.f32 %v1149, %v1208
    %v1270 = vmax.f32 %v1150, %v1210
    %v1271 = vmax.f32 %v1151, %v1212
    %v1272 = vmax.f32 %v1152, %v1214
    %v1273 = vmax.f32 %v1153, %v1216
    %v1274 = vmax.f32 %v1154, %v1218
    %v1275 = vmax.f32 %v1155, %v1220
    %v1276 = vmax.f32 %v1156, %v1222
    %v1277 = vmax.f32 %v1157, %v1224
    %v1278 = vmax.f32 %v1158, %v1226
    %v1279 = vmax.f32 %v1159, %v1228
    %v1280 = vmax.f32 %v1160, %v1230
    %v1281 = vmax.f32 %v1161, %v1232
    %v1282 = vmax.f32 %v1162, %v1234
    %v1283 = vsel %vm110, %v1261, 0.0
    %v1284 = vsel %vm110, %v1264, 0.0
    %v1285 = vsel %vm110, %v1267, 0.0
    %v1286 = vsel %vm110, %v1270, 0.0
    %v1287 = vsel %vm110, %v1273, 0.0
    %v1288 = vsel %vm110, %v1276, 0.0
    %v1289 = vsel %vm110, %v1279, 0.0
    %v1290 = vsel %vm110, %v1282, 0.0
    %v1315 = vrot.slane %v1259, 2
    %v1316 = vrot.slane %v1260, 2
    %v1317 = vsel %vm239, %v1315, %v1316
    %v1318 = vrot.slane %v1283, 2
    %v1319 = vsel %vm239, %v1316, %v1318
    %v1320 = vrot.slane %v1262, 2
    %v1321 = vrot.slane %v1263, 2
    %v1322 = vsel %vm239, %v1320, %v1321
    %v1323 = vrot.slane %v1284, 2
    %v1324 = vsel %vm239, %v1321, %v1323
    %v1325 = vrot.slane %v1265, 2
    %v1326 = vrot.slane %v1266, 2
    %v1327 = vsel %vm239, %v1325, %v1326
    %v1328 = vrot.slane %v1285, 2
    %v1329 = vsel %vm239, %v1326, %v1328
    %v1330 = vrot.slane %v1268, 2
    %v1331 = vrot.slane %v1269, 2
    %v1332 = vsel %vm239, %v1330, %v1331
    %v1333 = vrot.slane %v1286, 2
    %v1334 = vsel %vm239, %v1331, %v1333
    %v1335 = vrot.slane %v1271, 2
    %v1336 = vrot.slane %v1272, 2
    %v1337 = vsel %vm239, %v1335, %v1336
    %v1338 = vrot.slane %v1287, 2
    %v1339 = vsel %vm239, %v1336, %v1338
    %v1340 = vrot.slane %v1274, 2
    %v1341 = vrot.slane %v1275, 2
    %v1342 = vsel %vm239, %v1340, %v1341
    %v1343 = vrot.slane %v1288, 2
    %v1344 = vsel %vm239, %v1341, %v1343
    %v1345 = vrot.slane %v1277, 2
    %v1346 = vrot.slane %v1278, 2
    %v1347 = vsel %vm239, %v1345, %v1346
    %v1348 = vrot.slane %v1289, 2
    %v1349 = vsel %vm239, %v1346, %v1348
    %v1350 = vrot.slane %v1280, 2
    %v1351 = vrot.slane %v1281, 2
    %v1352 = vsel %vm239, %v1350, %v1351
    %v1353 = vrot.slane %v1290, 2
    %v1354 = vsel %vm239, %v1351, %v1353
    %1355 = vrot.lane.b32.xlu0 %v1317, 47
    %v1356 = vpop.permute.xlu0 %1355
    %1357 = vrot.lane.b32.xlu0 %v1319, 47
    %v1358 = vpop.permute.xlu0 %1357
    %1359 = vrot.lane.b32.xlu0 %v1322, 47
    %v1360 = vpop.permute.xlu0 %1359
    %1361 = vrot.lane.b32.xlu0 %v1324, 47
    %v1362 = vpop.permute.xlu0 %1361
    %1363 = vrot.lane.b32.xlu0 %v1327, 47
    %v1364 = vpop.permute.xlu0 %1363
    %1365 = vrot.lane.b32.xlu0 %v1329, 47
    %v1366 = vpop.permute.xlu0 %1365
    %1367 = vrot.lane.b32.xlu0 %v1332, 47
    %v1368 = vpop.permute.xlu0 %1367
    %1369 = vrot.lane.b32.xlu0 %v1334, 47
    %v1370 = vpop.permute.xlu0 %1369
    %1371 = vrot.lane.b32.xlu0 %v1337, 47
    %v1372 = vpop.permute.xlu0 %1371
    %1373 = vrot.lane.b32.xlu0 %v1339, 47
    %v1374 = vpop.permute.xlu0 %1373
    %1375 = vrot.lane.b32.xlu0 %v1342, 47
    %v1376 = vpop.permute.xlu0 %1375
    %1377 = vrot.lane.b32.xlu0 %v1344, 47
    %v1378 = vpop.permute.xlu0 %1377
    %1379 = vrot.lane.b32.xlu0 %v1347, 47
    %v1380 = vpop.permute.xlu0 %1379
    %1381 = vrot.lane.b32.xlu0 %v1349, 47
    %v1382 = vpop.permute.xlu0 %1381
    %1383 = vrot.lane.b32.xlu0 %v1352, 47
    %v1384 = vpop.permute.xlu0 %1383
    %1385 = vrot.lane.b32.xlu0 %v1354, 47
    %v1386 = vpop.permute.xlu0 %1385
    %v1403 = vrot.slane %v1259, 4
    %v1404 = vrot.slane %v1260, 4
    %v1405 = vsel %vm497, %v1403, %v1404
    %v1406 = vrot.slane %v1283, 4
    %v1407 = vsel %vm497, %v1404, %v1406
    %v1408 = vrot.slane %v1262, 4
    %v1409 = vrot.slane %v1263, 4
    %v1410 = vsel %vm497, %v1408, %v1409
    %v1411 = vrot.slane %v1284, 4
    %v1412 = vsel %vm497, %v1409, %v1411
    %v1413 = vrot.slane %v1265, 4
    %v1414 = vrot.slane %v1266, 4
    %v1415 = vsel %vm497, %v1413, %v1414
    %v1416 = vrot.slane %v1285, 4
    %v1417 = vsel %vm497, %v1414, %v1416
    %v1418 = vrot.slane %v1268, 4
    %v1419 = vrot.slane %v1269, 4
    %v1420 = vsel %vm497, %v1418, %v1419
    %v1421 = vrot.slane %v1286, 4
    %v1422 = vsel %vm497, %v1419, %v1421
    %v1423 = vrot.slane %v1271, 4
    %v1424 = vrot.slane %v1272, 4
    %v1425 = vsel %vm497, %v1423, %v1424
    %v1426 = vrot.slane %v1287, 4
    %v1427 = vsel %vm497, %v1424, %v1426
    %v1428 = vrot.slane %v1274, 4
    %v1429 = vrot.slane %v1275, 4
    %v1430 = vsel %vm497, %v1428, %v1429
    %v1431 = vrot.slane %v1288, 4
    %v1432 = vsel %vm497, %v1429, %v1431
    %v1433 = vrot.slane %v1277, 4
    %v1434 = vrot.slane %v1278, 4
    %v1435 = vsel %vm497, %v1433, %v1434
    %v1436 = vrot.slane %v1289, 4
    %v1437 = vsel %vm497, %v1434, %v1436
    %v1438 = vrot.slane %v1280, 4
    %v1439 = vrot.slane %v1281, 4
    %v1440 = vsel %vm497, %v1438, %v1439
    %v1441 = vrot.slane %v1290, 4
    %v1442 = vsel %vm497, %v1439, %v1441
    %1443 = vrot.lane.b32.xlu0 %v1405, 94
    %v1444 = vpop.permute.xlu0 %1443
    %1445 = vrot.lane.b32.xlu0 %v1407, 94
    %v1446 = vpop.permute.xlu0 %1445
    %1447 = vrot.lane.b32.xlu0 %v1410, 94
    %v1448 = vpop.permute.xlu0 %1447
    %1449 = vrot.lane.b32.xlu0 %v1412, 94
    %v1450 = vpop.permute.xlu0 %1449
    %1451 = vrot.lane.b32.xlu0 %v1415, 94
    %v1452 = vpop.permute.xlu0 %1451
    %1453 = vrot.lane.b32.xlu0 %v1417, 94
    %v1454 = vpop.permute.xlu0 %1453
    %1455 = vrot.lane.b32.xlu0 %v1420, 94
    %v1456 = vpop.permute.xlu0 %1455
    %1457 = vrot.lane.b32.xlu0 %v1422, 94
    %v1458 = vpop.permute.xlu0 %1457
    %1459 = vrot.lane.b32.xlu0 %v1425, 94
    %v1460 = vpop.permute.xlu0 %1459
    %1461 = vrot.lane.b32.xlu0 %v1427, 94
    %v1462 = vpop.permute.xlu0 %1461
    %1463 = vrot.lane.b32.xlu0 %v1430, 94
    %v1464 = vpop.permute.xlu0 %1463
    %1465 = vrot.lane.b32.xlu0 %v1432, 94
    %v1466 = vpop.permute.xlu0 %1465
    %1467 = vrot.lane.b32.xlu0 %v1435, 94
    %v1468 = vpop.permute.xlu0 %1467
    %1469 = vrot.lane.b32.xlu0 %v1437, 94
    %v1470 = vpop.permute.xlu0 %1469
    %1471 = vrot.lane.b32.xlu0 %v1440, 94
    %v1472 = vpop.permute.xlu0 %1471
    %1473 = vrot.lane.b32.xlu0 %v1442, 94
    %v1474 = vpop.permute.xlu0 %1473
    %vm1491 = vcmask 1041408
    %v1492 = vrot.slane %v1259, 6
    %v1493 = vrot.slane %v1260, 6
    %v1494 = vsel %vm1491, %v1492, %v1493
    %v1495 = vrot.slane %v1283, 6
    %v1496 = vsel %vm1491, %v1493, %v1495
    %v1497 = vrot.slane %v1262, 6
    %v1498 = vrot.slane %v1263, 6
    %v1499 = vsel %vm1491, %v1497, %v1498
    %v1500 = vrot.slane %v1284, 6
    %v1501 = vsel %vm1491, %v1498, %v1500
    %v1502 = vrot.slane %v1265, 6
    %v1503 = vrot.slane %v1266, 6
    %v1504 = vsel %vm1491, %v1502, %v1503
    %v1505 = vrot.slane %v1285, 6
    %v1506 = vsel %vm1491, %v1503, %v1505
    %v1507 = vrot.slane %v1268, 6
    %v1508 = vrot.slane %v1269, 6
    %v1509 = vsel %vm1491, %v1507, %v1508
    %v1510 = vrot.slane %v1286, 6
    %v1511 = vsel %vm1491, %v1508, %v1510
    %v1512 = vrot.slane %v1271, 6
    %v1513 = vrot.slane %v1272, 6
    %v1514 = vsel %vm1491, %v1512, %v1513
    %v1515 = vrot.slane %v1287, 6
    %v1516 = vsel %vm1491, %v1513, %v1515
    %v1517 = vrot.slane %v1274, 6
    %v1518 = vrot.slane %v1275, 6
    %v1519 = vsel %vm1491, %v1517, %v1518
    %v1520 = vrot.slane %v1288, 6
    %v1521 = vsel %vm1491, %v1518, %v1520
    %v1522 = vrot.slane %v1277, 6
    %v1523 = vrot.slane %v1278, 6
    %v1524 = vsel %vm1491, %v1522, %v1523
    %v1525 = vrot.slane %v1289, 6
    %v1526 = vsel %vm1491, %v1523, %v1525
    %v1527 = vrot.slane %v1280, 6
    %v1528 = vrot.slane %v1281, 6
    %v1529 = vsel %vm1491, %v1527, %v1528
    %v1530 = vrot.slane %v1290, 6
    %v1531 = vsel %vm1491, %v1528, %v1530
    %1532 = vrot.lane.b32.xlu0 %v1494, 13
    %v1533 = vpop.permute.xlu0 %1532
    %1534 = vrot.lane.b32.xlu0 %v1496, 13
    %v1535 = vpop.permute.xlu0 %1534
    %1536 = vrot.lane.b32.xlu0 %v1499, 13
    %v1537 = vpop.permute.xlu0 %1536
    %1538 = vrot.lane.b32.xlu0 %v1501, 13
    %v1539 = vpop.permute.xlu0 %1538
    %1540 = vrot.lane.b32.xlu0 %v1504, 13
    %v1541 = vpop.permute.xlu0 %1540
    %1542 = vrot.lane.b32.xlu0 %v1506, 13
    %v1543 = vpop.permute.xlu0 %1542
    %1544 = vrot.lane.b32.xlu0 %v1509, 13
    %v1545 = vpop.permute.xlu0 %1544
    %1546 = vrot.lane.b32.xlu0 %v1511, 13
    %v1547 = vpop.permute.xlu0 %1546
    %1548 = vrot.lane.b32.xlu0 %v1514, 13
    %v1549 = vpop.permute.xlu0 %1548
    %1550 = vrot.lane.b32.xlu0 %v1516, 13
    %v1551 = vpop.permute.xlu0 %1550
    %1552 = vrot.lane.b32.xlu0 %v1519, 13
    %v1553 = vpop.permute.xlu0 %1552
    %1554 = vrot.lane.b32.xlu0 %v1521, 13
    %v1555 = vpop.permute.xlu0 %1554
    %1556 = vrot.lane.b32.xlu0 %v1524, 13
    %v1557 = vpop.permute.xlu0 %1556
    %1558 = vrot.lane.b32.xlu0 %v1526, 13
    %v1559 = vpop.permute.xlu0 %1558
    %1560 = vrot.lane.b32.xlu0 %v1529, 13
    %v1561 = vpop.permute.xlu0 %1560
    %1562 = vrot.lane.b32.xlu0 %v1531, 13
    %v1563 = vpop.permute.xlu0 %1562
    %1580 = vrot.lane.b32.xlu0 %v1260, 60
    %v1581 = vpop.permute.xlu0 %1580
    %1582 = vrot.lane.b32.xlu0 %v1283, 60
    %v1583 = vpop.permute.xlu0 %1582
    %1584 = vrot.lane.b32.xlu0 %v1263, 60
    %v1585 = vpop.permute.xlu0 %1584
    %1586 = vrot.lane.b32.xlu0 %v1284, 60
    %v1587 = vpop.permute.xlu0 %1586
    %1588 = vrot.lane.b32.xlu0 %v1266, 60
    %v1589 = vpop.permute.xlu0 %1588
    %1590 = vrot.lane.b32.xlu0 %v1285, 60
    %v1591 = vpop.permute.xlu0 %1590
    %1592 = vrot.lane.b32.xlu0 %v1269, 60
    %v1593 = vpop.permute.xlu0 %1592
    %1594 = vrot.lane.b32.xlu0 %v1286, 60
    %v1595 = vpop.permute.xlu0 %1594
    %1596 = vrot.lane.b32.xlu0 %v1272, 60
    %v1597 = vpop.permute.xlu0 %1596
    %1598 = vrot.lane.b32.xlu0 %v1287, 60
    %v1599 = vpop.permute.xlu0 %1598
    %1600 = vrot.lane.b32.xlu0 %v1275, 60
    %v1601 = vpop.permute.xlu0 %1600
    %1602 = vrot.lane.b32.xlu0 %v1288, 60
    %v1603 = vpop.permute.xlu0 %1602
    %1604 = vrot.lane.b32.xlu0 %v1278, 60
    %v1605 = vpop.permute.xlu0 %1604
    %1606 = vrot.lane.b32.xlu0 %v1289, 60
    %v1607 = vpop.permute.xlu0 %1606
    %1608 = vrot.lane.b32.xlu0 %v1281, 60
    %v1609 = vpop.permute.xlu0 %1608
    %1610 = vrot.lane.b32.xlu0 %v1290, 60
    %v1611 = vpop.permute.xlu0 %1610
    %vm1628 = vcmask 384000
    %v1629 = vsel %vm1628, %v1259, %v1356
    %v1630 = vsel %vm1628, %v1260, %v1358
    %v1631 = vsel %vm1628, %v1262, %v1360
    %v1632 = vsel %vm1628, %v1263, %v1362
    %v1633 = vsel %vm1628, %v1265, %v1364
    %v1634 = vsel %vm1628, %v1266, %v1366
    %v1635 = vsel %vm1628, %v1268, %v1368
    %v1636 = vsel %vm1628, %v1269, %v1370
    %v1637 = vsel %vm1628, %v1271, %v1372
    %v1638 = vsel %vm1628, %v1272, %v1374
    %v1639 = vsel %vm1628, %v1274, %v1376
    %v1640 = vsel %vm1628, %v1275, %v1378
    %v1641 = vsel %vm1628, %v1277, %v1380
    %v1642 = vsel %vm1628, %v1278, %v1382
    %v1643 = vsel %vm1628, %v1280, %v1384
    %v1644 = vsel %vm1628, %v1281, %v1386
    %vm1645 = vcmask 769024
    %v1646 = vsel %vm1645, %v1629, %v1444
    %v1647 = vsel %vm1645, %v1630, %v1446
    %v1648 = vsel %vm1645, %v1631, %v1448
    %v1649 = vsel %vm1645, %v1632, %v1450
    %v1650 = vsel %vm1645, %v1633, %v1452
    %v1651 = vsel %vm1645, %v1634, %v1454
    %v1652 = vsel %vm1645, %v1635, %v1456
    %v1653 = vsel %vm1645, %v1636, %v1458
    %v1654 = vsel %vm1645, %v1637, %v1460
    %v1655 = vsel %vm1645, %v1638, %v1462
    %v1656 = vsel %vm1645, %v1639, %v1464
    %v1657 = vsel %vm1645, %v1640, %v1466
    %v1658 = vsel %vm1645, %v1641, %v1468
    %v1659 = vsel %vm1645, %v1642, %v1470
    %v1660 = vsel %vm1645, %v1643, %v1472
    %v1661 = vsel %vm1645, %v1644, %v1474
    %vm1662 = vcmask 105472
    %v1663 = vsel %vm1662, %v1444, %v1533
    %v1664 = vsel %vm1662, %v1446, %v1535
    %v1665 = vsel %vm1662, %v1448, %v1537
    %v1666 = vsel %vm1662, %v1450, %v1539
    %v1667 = vsel %vm1662, %v1452, %v1541
    %v1668 = vsel %vm1662, %v1454, %v1543
    %v1669 = vsel %vm1662, %v1456, %v1545
    %v1670 = vsel %vm1662, %v1458, %v1547
    %v1671 = vsel %vm1662, %v1460, %v1549
    %v1672 = vsel %vm1662, %v1462, %v1551
    %v1673 = vsel %vm1662, %v1464, %v1553
    %v1674 = vsel %vm1662, %v1466, %v1555
    %v1675 = vsel %vm1662, %v1468, %v1557
    %v1676 = vsel %vm1662, %v1470, %v1559
    %v1677 = vsel %vm1662, %v1472, %v1561
    %v1678 = vsel %vm1662, %v1474, %v1563
    %vm1679 = vcmask 490496
    %v1680 = vsel %vm1679, %v1663, %v1581
    %v1681 = vsel %vm1679, %v1664, %v1583
    %v1682 = vsel %vm1679, %v1665, %v1585
    %v1683 = vsel %vm1679, %v1666, %v1587
    %v1684 = vsel %vm1679, %v1667, %v1589
    %v1685 = vsel %vm1679, %v1668, %v1591
    %v1686 = vsel %vm1679, %v1669, %v1593
    %v1687 = vsel %vm1679, %v1670, %v1595
    %v1688 = vsel %vm1679, %v1671, %v1597
    %v1689 = vsel %vm1679, %v1672, %v1599
    %v1690 = vsel %vm1679, %v1673, %v1601
    %v1691 = vsel %vm1679, %v1674, %v1603
    %v1692 = vsel %vm1679, %v1675, %v1605
    %v1693 = vsel %vm1679, %v1676, %v1607
    %v1694 = vsel %vm1679, %v1677, %v1609
    %v1695 = vsel %vm1679, %v1678, %v1611
    %v1696 = vpack.c.bf16 %v1647, %v1646
    %v1697 = vpack.c.bf16 %v1681, %v1680
    %v1698 = vpack.c.bf16 %v1649, %v1648
    %v1699 = vpack.c.bf16 %v1683, %v1682
    %v1700 = vpack.c.bf16 %v1651, %v1650
    %v1701 = vpack.c.bf16 %v1685, %v1684
    %v1702 = vpack.c.bf16 %v1653, %v1652
    %v1703 = vpack.c.bf16 %v1687, %v1686
    %v1704 = vpack.c.bf16 %v1655, %v1654
    %v1705 = vpack.c.bf16 %v1689, %v1688
    %v1706 = vpack.c.bf16 %v1657, %v1656
    %v1707 = vpack.c.bf16 %v1691, %v1690
    %v1708 = vpack.c.bf16 %v1659, %v1658
    %v1709 = vpack.c.bf16 %v1693, %v1692
    %v1710 = vpack.c.bf16 %v1661, %v1660
    %v1711 = vpack.c.bf16 %v1695, %v1694
    %v1712 = vld [vmem:[%s3] sm:$0xf]
    %v1713 = vld [vmem:[%s3 + $0x4] sm:$0xf]
    %v1714 = vld [vmem:[%s3 + $0x8] sm:$0xf]
    %v1715 = vld [vmem:[%s3 + $0xc] sm:$0xf]
    %v1716 = vld [vmem:[%s3 + $0x10] sm:$0xf]
    %v1717 = vld [vmem:[%s3 + $0x14] sm:$0xf]
    %v1718 = vld [vmem:[%s3 + $0x18] sm:$0xf]
    %v1719 = vld [vmem:[%s3 + $0x1c] sm:$0xf]
    %v1720 = vld [vmem:[%s3 + $0x20] sm:$0xf]
    %v1721 = vld [vmem:[%s3 + $0x24] sm:$0xf]
    %v1722 = vld [vmem:[%s3 + $0x28] sm:$0xf]
    %v1723 = vld [vmem:[%s3 + $0x2c] sm:$0xf]
    %v1724 = vld [vmem:[%s3 + $0x30] sm:$0xf]
    %v1725 = vld [vmem:[%s3 + $0x34] sm:$0xf]
    %v1726 = vld [vmem:[%s3 + $0x38] sm:$0xf]
    %v1727 = vld [vmem:[%s3 + $0x3c] sm:$0xf]
    %v1728 = vld [vmem:[%s3 + $0x40] sm:$0xf]
    %v1729 = vld [vmem:[%s3 + $0x44] sm:$0xf]
    %v1730 = vld [vmem:[%s3 + $0x48] sm:$0xf]
    %v1731 = vld [vmem:[%s3 + $0x4c] sm:$0xf]
    %v1732 = vld [vmem:[%s3 + $0x50] sm:$0xf]
    %v1733 = vld [vmem:[%s3 + $0x54] sm:$0xf]
    %v1734 = vld [vmem:[%s3 + $0x58] sm:$0xf]
    %v1735 = vld [vmem:[%s3 + $0x5c] sm:$0xf]
    %v1736 = vld [vmem:[%s3 + $0x60] sm:$0xf]
    %v1737 = vld [vmem:[%s3 + $0x64] sm:$0xf]
    %v1738 = vld [vmem:[%s3 + $0x68] sm:$0xf]
    %v1739 = vld [vmem:[%s3 + $0x6c] sm:$0xf]
    %v1740 = vld [vmem:[%s3 + $0x70] sm:$0xf]
    %v1741 = vld [vmem:[%s3 + $0x74] sm:$0x3]
    %v1772 = vunpack.c.l.b16 %v1712
    %v1773 = vunpack.c.l.b16 %v1713
    %v1774 = vunpack.c.l.b16 %v1714
    %v1775 = vunpack.c.l.b16 %v1715
    %v1776 = vunpack.c.l.b16 %v1716
    %v1777 = vunpack.c.l.b16 %v1717
    %v1778 = vunpack.c.l.b16 %v1718
    %v1779 = vunpack.c.l.b16 %v1719
    %v1780 = vunpack.c.l.b16 %v1720
    %v1781 = vunpack.c.l.b16 %v1721
    %v1782 = vunpack.c.l.b16 %v1722
    %v1783 = vunpack.c.l.b16 %v1723
    %v1784 = vunpack.c.l.b16 %v1724
    %v1785 = vunpack.c.l.b16 %v1725
    %v1786 = vunpack.c.l.b16 %v1726
    %v1787 = vunpack.c.l.b16 %v1727
    %v1788 = vunpack.c.l.b16 %v1728
    %v1789 = vunpack.c.l.b16 %v1729
    %v1790 = vunpack.c.l.b16 %v1730
    %v1791 = vunpack.c.l.b16 %v1731
    %v1792 = vunpack.c.l.b16 %v1732
    %v1793 = vunpack.c.l.b16 %v1733
    %v1794 = vunpack.c.l.b16 %v1734
    %v1795 = vunpack.c.l.b16 %v1735
    %v1796 = vunpack.c.l.b16 %v1736
    %v1797 = vunpack.c.l.b16 %v1737
    %v1798 = vunpack.c.l.b16 %v1738
    %v1799 = vunpack.c.l.b16 %v1739
    %v1800 = vunpack.c.l.b16 %v1740
    %v1801 = vunpack.c.l.b16 %v1741
    %v1802 = vpack.c.b16 %v1773, %v1772
    %v1803 = vpack.c.b16 %v1775, %v1774
    %v1804 = vpack.c.b16 %v1777, %v1776
    %v1805 = vpack.c.b16 %v1779, %v1778
    %v1806 = vpack.c.b16 %v1781, %v1780
    %v1807 = vpack.c.b16 %v1783, %v1782
    %v1808 = vpack.c.b16 %v1785, %v1784
    %v1809 = vpack.c.b16 %v1787, %v1786
    %v1810 = vpack.c.b16 %v1789, %v1788
    %v1811 = vpack.c.b16 %v1791, %v1790
    %v1812 = vpack.c.b16 %v1793, %v1792
    %v1813 = vpack.c.b16 %v1795, %v1794
    %v1814 = vpack.c.b16 %v1797, %v1796
    %v1815 = vpack.c.b16 %v1799, %v1798
    %v1816 = vpack.c.b16 %v1801, %v1800
    %vm1831 = vcmask 875520
    %v1833 = vsel %vm1831, %v1697, 0
    %v1836 = vsel %vm1831, %v1699, 0
    %v1839 = vsel %vm1831, %v1701, 0
    %v1842 = vsel %vm1831, %v1703, 0
    %v1845 = vsel %vm1831, %v1705, 0
    %v1848 = vsel %vm1831, %v1707, 0
    %v1851 = vsel %vm1831, %v1709, 0
    %v1854 = vsel %vm1831, %v1711, 0
    %v1856 = vsel %vm368, 4294967295, 65535
    %v1857 = vsel %vm239, %v1856, 0
    %v1859 = vand.u32 %v1816, %v1857
    %1861 = vmatpush.bf16.msra.mxu0 %v1809
    %1862 = vmatpush.bf16.msra.mxu0 %v1808
    %1863 = vmatpush.bf16.msra.mxu0 %v1807
    %1864 = vmatpush.bf16.msra.mxu0 %v1806
    %1865 = vmatpush.bf16.msra.mxu0 %v1805
    %1866 = vmatpush.bf16.msra.mxu0 %v1804
    %1867 = vmatpush.bf16.msra.mxu0 %v1803
    %1868 = vmatpush.bf16.msra.mxu0 %v1802
    %1869 = vmatmul.bf16.gmra.mxu0 %v1696
    %v1870 = vpop.f32.mrf.mxu0
    %v1871 = vadd.f32 0.0, %v1870
    %v1872 = vpop.f32.mrf.mxu0
    %v1873 = vadd.f32 0.0, %v1872
    %1874 = vmatmul.bf16.gmra.mxu0 %v1698
    %v1875 = vpop.f32.mrf.mxu0
    %v1876 = vadd.f32 0.0, %v1875
    %v1877 = vpop.f32.mrf.mxu0
    %v1878 = vadd.f32 0.0, %v1877
    %1879 = vmatmul.bf16.gmra.mxu0 %v1700
    %v1880 = vpop.f32.mrf.mxu0
    %v1881 = vadd.f32 0.0, %v1880
    %v1882 = vpop.f32.mrf.mxu0
    %v1883 = vadd.f32 0.0, %v1882
    %1884 = vmatmul.bf16.gmra.mxu0 %v1702
    %v1885 = vpop.f32.mrf.mxu0
    %v1886 = vadd.f32 0.0, %v1885
    %v1887 = vpop.f32.mrf.mxu0
    %v1888 = vadd.f32 0.0, %v1887
    %1889 = vmatmul.bf16.gmra.mxu0 %v1704
    %v1890 = vpop.f32.mrf.mxu0
    %v1891 = vadd.f32 0.0, %v1890
    %v1892 = vpop.f32.mrf.mxu0
    %v1893 = vadd.f32 0.0, %v1892
    %1894 = vmatmul.bf16.gmra.mxu0 %v1706
    %v1895 = vpop.f32.mrf.mxu0
    %v1896 = vadd.f32 0.0, %v1895
    %v1897 = vpop.f32.mrf.mxu0
    %v1898 = vadd.f32 0.0, %v1897
    %1899 = vmatmul.bf16.gmra.mxu0 %v1708
    %v1900 = vpop.f32.mrf.mxu0
    %v1901 = vadd.f32 0.0, %v1900
    %v1902 = vpop.f32.mrf.mxu0
    %v1903 = vadd.f32 0.0, %v1902
    %1904 = vmatmul.bf16.gmra.mxu0 %v1710
    %v1905 = vpop.f32.mrf.mxu0
    %v1906 = vadd.f32 0.0, %v1905
    %v1907 = vpop.f32.mrf.mxu0
    %v1908 = vadd.f32 0.0, %v1907
    %1909 = vdwg.mxu0
    %1910 = vmatpush.bf16.msra.mxu0 0
    %1911 = vmatpush.bf16.msra.mxu0 %v1859
    %1912 = vmatpush.bf16.msra.mxu0 %v1815
    %1913 = vmatpush.bf16.msra.mxu0 %v1814
    %1914 = vmatpush.bf16.msra.mxu0 %v1813
    %1915 = vmatpush.bf16.msra.mxu0 %v1812
    %1916 = vmatpush.bf16.msra.mxu0 %v1811
    %1917 = vmatpush.bf16.msra.mxu0 %v1810
    %1918 = vmatmul.bf16.gmra.mxu0 %v1833
    %v1919 = vpop.f32.mrf.mxu0
    %v1920 = vadd.f32 %v1871, %v1919
    %v1921 = vpop.f32.mrf.mxu0
    %v1922 = vadd.f32 %v1873, %v1921
    %1923 = vmatmul.bf16.gmra.mxu0 %v1836
    %v1924 = vpop.f32.mrf.mxu0
    %v1925 = vadd.f32 %v1876, %v1924
    %v1926 = vpop.f32.mrf.mxu0
    %v1927 = vadd.f32 %v1878, %v1926
    %1928 = vmatmul.bf16.gmra.mxu0 %v1839
    %v1929 = vpop.f32.mrf.mxu0
    %v1930 = vadd.f32 %v1881, %v1929
    %v1931 = vpop.f32.mrf.mxu0
    %v1932 = vadd.f32 %v1883, %v1931
    %1933 = vmatmul.bf16.gmra.mxu0 %v1842
    %v1934 = vpop.f32.mrf.mxu0
    %v1935 = vadd.f32 %v1886, %v1934
    %v1936 = vpop.f32.mrf.mxu0
    %v1937 = vadd.f32 %v1888, %v1936
    %1938 = vmatmul.bf16.gmra.mxu0 %v1845
    %v1939 = vpop.f32.mrf.mxu0
    %v1940 = vadd.f32 %v1891, %v1939
    %v1941 = vpop.f32.mrf.mxu0
    %v1942 = vadd.f32 %v1893, %v1941
    %1943 = vmatmul.bf16.gmra.mxu0 %v1848
    %v1944 = vpop.f32.mrf.mxu0
    %v1945 = vadd.f32 %v1896, %v1944
    %v1946 = vpop.f32.mrf.mxu0
    %v1947 = vadd.f32 %v1898, %v1946
    %1948 = vmatmul.bf16.gmra.mxu0 %v1851
    %v1949 = vpop.f32.mrf.mxu0
    %v1950 = vadd.f32 %v1901, %v1949
    %v1951 = vpop.f32.mrf.mxu0
    %v1952 = vadd.f32 %v1903, %v1951
    %1953 = vmatmul.bf16.gmra.mxu0 %v1854
    %v1954 = vpop.f32.mrf.mxu0
    %v1955 = vadd.f32 %v1906, %v1954
    %v1956 = vpop.f32.mrf.mxu0
    %v1957 = vadd.f32 %v1908, %v1956
    %1958 = vdwg.mxu0
    %v1959 = vld [vmem:[%s4] sm:$0x1]
    %v1961 = vperm.slane %v1959, 0
    %v1963 = vadd.f32 %v1920, %v1961
    %v1964 = vadd.f32 %v1922, %v1961
    %v1965 = vadd.f32 %v1925, %v1961
    %v1966 = vadd.f32 %v1927, %v1961
    %v1967 = vadd.f32 %v1930, %v1961
    %v1968 = vadd.f32 %v1932, %v1961
    %v1969 = vadd.f32 %v1935, %v1961
    %v1970 = vadd.f32 %v1937, %v1961
    %v1971 = vadd.f32 %v1940, %v1961
    %v1972 = vadd.f32 %v1942, %v1961
    %v1973 = vadd.f32 %v1945, %v1961
    %v1974 = vadd.f32 %v1947, %v1961
    %v1975 = vadd.f32 %v1950, %v1961
    %v1976 = vadd.f32 %v1952, %v1961
    %v1977 = vadd.f32 %v1955, %v1961
    %v1978 = vadd.f32 %v1957, %v1961
    %v1979 = vmax.f32 %v1963, 0.0
    %v1980 = vmax.f32 %v1964, 0.0
    %v1981 = vmax.f32 %v1965, 0.0
    %v1982 = vmax.f32 %v1966, 0.0
    %v1983 = vmax.f32 %v1967, 0.0
    %v1984 = vmax.f32 %v1968, 0.0
    %v1985 = vmax.f32 %v1969, 0.0
    %v1986 = vmax.f32 %v1970, 0.0
    %v1987 = vmax.f32 %v1971, 0.0
    %v1988 = vmax.f32 %v1972, 0.0
    %v1989 = vmax.f32 %v1973, 0.0
    %v1990 = vmax.f32 %v1974, 0.0
    %v1991 = vmax.f32 %v1975, 0.0
    %v1992 = vmax.f32 %v1976, 0.0
    %v1993 = vmax.f32 %v1977, 0.0
    %v1994 = vmax.f32 %v1978, 0.0
    %v2011 = vrot.slane %v1979, 2
    %v2012 = vrot.slane %v1980, 2
    %v2013 = vsel %vm239, %v2011, %v2012
    %v2014 = vrot.slane %v1981, 2
    %v2015 = vrot.slane %v1982, 2
    %v2016 = vsel %vm239, %v2014, %v2015
    %v2017 = vrot.slane %v1983, 2
    %v2018 = vrot.slane %v1984, 2
    %v2019 = vsel %vm239, %v2017, %v2018
    %v2020 = vrot.slane %v1985, 2
    %v2021 = vrot.slane %v1986, 2
    %v2022 = vsel %vm239, %v2020, %v2021
    %v2023 = vrot.slane %v1987, 2
    %v2024 = vrot.slane %v1988, 2
    %v2025 = vsel %vm239, %v2023, %v2024
    %v2026 = vrot.slane %v1989, 2
    %v2027 = vrot.slane %v1990, 2
    %v2028 = vsel %vm239, %v2026, %v2027
    %v2029 = vrot.slane %v1991, 2
    %v2030 = vrot.slane %v1992, 2
    %v2031 = vsel %vm239, %v2029, %v2030
    %v2032 = vrot.slane %v1993, 2
    %v2033 = vrot.slane %v1994, 2
    %v2034 = vsel %vm239, %v2032, %v2033
    %v2051 = vmax.f32 %v1979, %v2013
    %v2052 = vmax.f32 %v1980, %v2012
    %v2053 = vmax.f32 %v1981, %v2016
    %v2054 = vmax.f32 %v1982, %v2015
    %v2055 = vmax.f32 %v1983, %v2019
    %v2056 = vmax.f32 %v1984, %v2018
    %v2057 = vmax.f32 %v1985, %v2022
    %v2058 = vmax.f32 %v1986, %v2021
    %v2059 = vmax.f32 %v1987, %v2025
    %v2060 = vmax.f32 %v1988, %v2024
    %v2061 = vmax.f32 %v1989, %v2028
    %v2062 = vmax.f32 %v1990, %v2027
    %v2063 = vmax.f32 %v1991, %v2031
    %v2064 = vmax.f32 %v1992, %v2030
    %v2065 = vmax.f32 %v1993, %v2034
    %v2066 = vmax.f32 %v1994, %v2033
    %2083 = vrot.lane.b32.xlu0 %v2051, 127
    %v2084 = vpop.permute.xlu0 %2083
    %2085 = vrot.lane.b32.xlu0 %v2052, 127
    %v2086 = vpop.permute.xlu0 %2085
    %2087 = vrot.lane.b32.xlu0 %v2053, 127
    %v2088 = vpop.permute.xlu0 %2087
    %2089 = vrot.lane.b32.xlu0 %v2054, 127
    %v2090 = vpop.permute.xlu0 %2089
    %2091 = vrot.lane.b32.xlu0 %v2055, 127
    %v2092 = vpop.permute.xlu0 %2091
    %2093 = vrot.lane.b32.xlu0 %v2056, 127
    %v2094 = vpop.permute.xlu0 %2093
    %2095 = vrot.lane.b32.xlu0 %v2057, 127
    %v2096 = vpop.permute.xlu0 %2095
    %2097 = vrot.lane.b32.xlu0 %v2058, 127
    %v2098 = vpop.permute.xlu0 %2097
    %2099 = vrot.lane.b32.xlu0 %v2059, 127
    %v2100 = vpop.permute.xlu0 %2099
    %2101 = vrot.lane.b32.xlu0 %v2060, 127
    %v2102 = vpop.permute.xlu0 %2101
    %2103 = vrot.lane.b32.xlu0 %v2061, 127
    %v2104 = vpop.permute.xlu0 %2103
    %2105 = vrot.lane.b32.xlu0 %v2062, 127
    %v2106 = vpop.permute.xlu0 %2105
    %2107 = vrot.lane.b32.xlu0 %v2063, 127
    %v2108 = vpop.permute.xlu0 %2107
    %2109 = vrot.lane.b32.xlu0 %v2064, 127
    %v2110 = vpop.permute.xlu0 %2109
    %2111 = vrot.lane.b32.xlu0 %v2065, 127
    %v2112 = vpop.permute.xlu0 %2111
    %2113 = vrot.lane.b32.xlu0 %v2066, 127
    %v2114 = vpop.permute.xlu0 %2113
    %v2131 = vmax.f32 %v2051, %v2084
    %v2132 = vmax.f32 %v2052, %v2086
    %v2133 = vmax.f32 %v2053, %v2088
    %v2134 = vmax.f32 %v2054, %v2090
    %v2135 = vmax.f32 %v2055, %v2092
    %v2136 = vmax.f32 %v2056, %v2094
    %v2137 = vmax.f32 %v2057, %v2096
    %v2138 = vmax.f32 %v2058, %v2098
    %v2139 = vmax.f32 %v2059, %v2100
    %v2140 = vmax.f32 %v2060, %v2102
    %v2141 = vmax.f32 %v2061, %v2104
    %v2142 = vmax.f32 %v2062, %v2106
    %v2143 = vmax.f32 %v2063, %v2108
    %v2144 = vmax.f32 %v2064, %v2110
    %v2145 = vmax.f32 %v2065, %v2112
    %v2146 = vmax.f32 %v2066, %v2114
    %v2155 = vrot.slane %v2133, 7
    %vm2156 = vcmask 1041409
    %v2157 = vsel %vm2156, %v2155, %v2131
    %v2158 = vrot.slane %v2135, 6
    %vm2159 = vcmask 1042434
    %v2160 = vsel %vm2159, %v2158, %v2157
    %v2161 = vrot.slane %v2137, 5
    %vm2162 = vcmask 1043459
    %v2163 = vsel %vm2162, %v2161, %v2160
    %v2164 = vrot.slane %v2139, 4
    %vm2165 = vcmask 1044484
    %v2166 = vsel %vm2165, %v2164, %v2163
    %v2167 = vrot.slane %v2141, 3
    %vm2168 = vcmask 1045509
    %v2169 = vsel %vm2168, %v2167, %v2166
    %v2170 = vrot.slane %v2143, 2
    %vm2171 = vcmask 1046534
    %v2172 = vsel %vm2171, %v2170, %v2169
    %v2173 = vrot.slane %v2145, 1
    %vm2174 = vcmask 1047559
    %v2175 = vsel %vm2174, %v2173, %v2172
    %v2177 = vrot.slane %v2131, 4
    %v2178 = vrot.slane %v2133, 3
    %v2179 = vsel %vm2156, %v2178, %v2177
    %v2180 = vrot.slane %v2135, 2
    %v2181 = vsel %vm2159, %v2180, %v2179
    %v2182 = vrot.slane %v2137, 1
    %v2183 = vsel %vm2162, %v2182, %v2181
    %v2184 = vsel %vm2165, %v2139, %v2183
    %v2185 = vrot.slane %v2141, 7
    %v2186 = vsel %vm2168, %v2185, %v2184
    %v2187 = vrot.slane %v2143, 6
    %v2188 = vsel %vm2171, %v2187, %v2186
    %v2189 = vrot.slane %v2145, 5
    %v2190 = vsel %vm2174, %v2189, %v2188
    %2191 = vrot.lane.b32.xlu0 %v2190, 127
    %v2192 = vpop.permute.xlu0 %2191
    %v2202 = vrot.slane %v2134, 7
    %v2203 = vsel %vm2156, %v2202, %v2132
    %v2204 = vrot.slane %v2136, 6
    %v2205 = vsel %vm2159, %v2204, %v2203
    %v2206 = vrot.slane %v2138, 5
    %v2207 = vsel %vm2162, %v2206, %v2205
    %v2208 = vrot.slane %v2140, 4
    %v2209 = vsel %vm2165, %v2208, %v2207
    %v2210 = vrot.slane %v2142, 3
    %v2211 = vsel %vm2168, %v2210, %v2209
    %v2212 = vrot.slane %v2144, 2
    %v2213 = vsel %vm2171, %v2212, %v2211
    %v2214 = vrot.slane %v2146, 1
    %v2215 = vsel %vm2174, %v2214, %v2213
    %2216 = vrot.lane.b32.xlu0 %v2215, 126
    %v2217 = vpop.permute.xlu0 %2216
    %v2219 = vrot.slane %v2132, 4
    %v2220 = vrot.slane %v2134, 3
    %v2221 = vsel %vm2156, %v2220, %v2219
    %v2222 = vrot.slane %v2136, 2
    %v2223 = vsel %vm2159, %v2222, %v2221
    %v2224 = vrot.slane %v2138, 1
    %v2225 = vsel %vm2162, %v2224, %v2223
    %v2226 = vsel %vm2165, %v2140, %v2225
    %v2227 = vrot.slane %v2142, 7
    %v2228 = vsel %vm2168, %v2227, %v2226
    %v2229 = vrot.slane %v2144, 6
    %v2230 = vsel %vm2171, %v2229, %v2228
    %v2231 = vrot.slane %v2146, 5
    %v2232 = vsel %vm2174, %v2231, %v2230
    %2233 = vrot.lane.b32.xlu0 %v2232, 125
    %v2234 = vpop.permute.xlu0 %2233
    %vm2236 = vcmask 1039360
    %v2237 = vsel %vm2236, %v2175, %v2192
    %vm2238 = vcmask 1031168
    %v2239 = vsel %vm2238, %v2192, %v2217
    %vm2240 = vcmask 1022976
    %v2241 = vsel %vm2240, %v2217, %v2234
    %v2242 = vpack.c.bf16 %v2237, %v2237
    %v2243 = vpack.c.bf16 %v2239, %v2239
    %v2244 = vpack.c.bf16 %v2241, %v2241
    %v2245 = vpack.c.bf16 %v2234, %v2234
    %v2246 = vld [vmem:[%s5] sm:$0xf]
    %v2247 = vld [vmem:[%s5 + $0x4] sm:$0xf]
    %v2248 = vld [vmem:[%s5 + $0x8] sm:$0xf]
    %v2249 = vld [vmem:[%s5 + $0xc] sm:$0xf]
    %v2250 = vld [vmem:[%s5 + $0x10] sm:$0xf]
    %v2251 = vld [vmem:[%s5 + $0x14] sm:$0xf]
    %v2252 = vld [vmem:[%s5 + $0x18] sm:$0xf]
    %v2253 = vld [vmem:[%s5 + $0x1c] sm:$0xf]
    %v2254 = vld [vmem:[%s5 + $0x20] sm:$0xf]
    %v2255 = vld [vmem:[%s5 + $0x24] sm:$0xf]
    %v2256 = vld [vmem:[%s5 + $0x28] sm:$0xf]
    %v2257 = vld [vmem:[%s5 + $0x2c] sm:$0xf]
    %v2258 = vld [vmem:[%s5 + $0x30] sm:$0xf]
    %v2259 = vld [vmem:[%s5 + $0x34] sm:$0xf]
    %v2260 = vld [vmem:[%s5 + $0x38] sm:$0xf]
    %v2261 = vld [vmem:[%s5 + $0x3c] sm:$0xf]
    %v2262 = vld [vmem:[%s5 + $0x40] sm:$0xf]
    %v2263 = vld [vmem:[%s5 + $0x44] sm:$0xf]
    %v2264 = vld [vmem:[%s5 + $0x48] sm:$0xf]
    %v2265 = vld [vmem:[%s5 + $0x4c] sm:$0xf]
    %v2266 = vld [vmem:[%s5 + $0x50] sm:$0xf]
    %v2267 = vld [vmem:[%s5 + $0x54] sm:$0xf]
    %v2268 = vld [vmem:[%s5 + $0x58] sm:$0xf]
    %v2269 = vld [vmem:[%s5 + $0x5c] sm:$0xf]
    %v2270 = vld [vmem:[%s5 + $0x60] sm:$0xf]
    %v2271 = vld [vmem:[%s5 + $0x64] sm:$0xf]
    %v2272 = vld [vmem:[%s5 + $0x68] sm:$0xf]
    %v2273 = vld [vmem:[%s5 + $0x6c] sm:$0xf]
    %v2274 = vld [vmem:[%s5 + $0x70] sm:$0xf]
    %v2275 = vld [vmem:[%s5 + $0x74] sm:$0xf]
    %v2276 = vld [vmem:[%s5 + $0x78] sm:$0xf]
    %v2277 = vld [vmem:[%s5 + $0x7c] sm:$0xf]
    %v2278 = vld [vmem:[%s5 + $0x80] sm:$0xf]
    %v2279 = vld [vmem:[%s5 + $0x84] sm:$0xf]
    %v2280 = vld [vmem:[%s5 + $0x88] sm:$0xf]
    %v2281 = vld [vmem:[%s5 + $0x8c] sm:$0xf]
    %v2282 = vld [vmem:[%s5 + $0x90] sm:$0xf]
    %v2283 = vld [vmem:[%s5 + $0x94] sm:$0xf]
    %v2284 = vld [vmem:[%s5 + $0x98] sm:$0xf]
    %v2285 = vld [vmem:[%s5 + $0x9c] sm:$0xf]
    %v2286 = vld [vmem:[%s5 + $0xa0] sm:$0xf]
    %v2287 = vld [vmem:[%s5 + $0xa4] sm:$0xf]
    %v2288 = vld [vmem:[%s5 + $0xa8] sm:$0xf]
    %v2289 = vld [vmem:[%s5 + $0xac] sm:$0xf]
    %v2290 = vld [vmem:[%s5 + $0xb0] sm:$0xf]
    %v2291 = vld [vmem:[%s5 + $0xb4] sm:$0xf]
    %v2292 = vld [vmem:[%s5 + $0xb8] sm:$0xf]
    %v2293 = vld [vmem:[%s5 + $0xbc] sm:$0xf]
    %v2294 = vld [vmem:[%s5 + $0xc0] sm:$0xf]
    %v2295 = vld [vmem:[%s5 + $0xc4] sm:$0xf]
    %v2296 = vld [vmem:[%s5 + $0xc8] sm:$0xf]
    %v2297 = vld [vmem:[%s5 + $0xcc] sm:$0xf]
    %v2298 = vld [vmem:[%s5 + $0xd0] sm:$0xf]
    %v2299 = vld [vmem:[%s5 + $0xd4] sm:$0xf]
    %v2300 = vld [vmem:[%s5 + $0xd8] sm:$0xf]
    %v2301 = vld [vmem:[%s5 + $0xdc] sm:$0xf]
    %v2302 = vld [vmem:[%s5 + $0xe0] sm:$0xf]
    %v2303 = vld [vmem:[%s5 + $0xe4] sm:$0xf]
    %v2304 = vld [vmem:[%s5 + $0xe8] sm:$0xf]
    %v2305 = vld [vmem:[%s5 + $0xec] sm:$0xf]
    %v2306 = vld [vmem:[%s5 + $0xf0] sm:$0xf]
    %v2307 = vld [vmem:[%s5 + $0xf4] sm:$0xf]
    %v2308 = vld [vmem:[%s5 + $0xf8] sm:$0xf]
    %v2309 = vld [vmem:[%s5 + $0xfc] sm:$0x3]
    %v2310 = vld [vmem:[%s6] sm:$0x1]
    %v2312 = vperm.slane %v2310, 0
    %v2378 = vunpack.c.l.b16 %v2246
    %v2379 = vunpack.c.l.b16 %v2247
    %v2380 = vunpack.c.l.b16 %v2248
    %v2381 = vunpack.c.l.b16 %v2249
    %v2382 = vunpack.c.l.b16 %v2250
    %v2383 = vunpack.c.l.b16 %v2251
    %v2384 = vunpack.c.l.b16 %v2252
    %v2385 = vunpack.c.l.b16 %v2253
    %v2386 = vunpack.c.l.b16 %v2254
    %v2387 = vunpack.c.l.b16 %v2255
    %v2388 = vunpack.c.l.b16 %v2256
    %v2389 = vunpack.c.l.b16 %v2257
    %v2390 = vunpack.c.l.b16 %v2258
    %v2391 = vunpack.c.l.b16 %v2259
    %v2392 = vunpack.c.l.b16 %v2260
    %v2393 = vunpack.c.l.b16 %v2261
    %v2394 = vunpack.c.l.b16 %v2262
    %v2395 = vunpack.c.l.b16 %v2263
    %v2396 = vunpack.c.l.b16 %v2264
    %v2397 = vunpack.c.l.b16 %v2265
    %v2398 = vunpack.c.l.b16 %v2266
    %v2399 = vunpack.c.l.b16 %v2267
    %v2400 = vunpack.c.l.b16 %v2268
    %v2401 = vunpack.c.l.b16 %v2269
    %v2402 = vunpack.c.l.b16 %v2270
    %v2403 = vunpack.c.l.b16 %v2271
    %v2404 = vunpack.c.l.b16 %v2272
    %v2405 = vunpack.c.l.b16 %v2273
    %v2406 = vunpack.c.l.b16 %v2274
    %v2407 = vunpack.c.l.b16 %v2275
    %v2408 = vunpack.c.l.b16 %v2276
    %v2409 = vunpack.c.l.b16 %v2277
    %v2410 = vunpack.c.l.b16 %v2278
    %v2411 = vunpack.c.l.b16 %v2279
    %v2412 = vunpack.c.l.b16 %v2280
    %v2413 = vunpack.c.l.b16 %v2281
    %v2414 = vunpack.c.l.b16 %v2282
    %v2415 = vunpack.c.l.b16 %v2283
    %v2416 = vunpack.c.l.b16 %v2284
    %v2417 = vunpack.c.l.b16 %v2285
    %v2418 = vunpack.c.l.b16 %v2286
    %v2419 = vunpack.c.l.b16 %v2287
    %v2420 = vunpack.c.l.b16 %v2288
    %v2421 = vunpack.c.l.b16 %v2289
    %v2422 = vunpack.c.l.b16 %v2290
    %v2423 = vunpack.c.l.b16 %v2291
    %v2424 = vunpack.c.l.b16 %v2292
    %v2425 = vunpack.c.l.b16 %v2293
    %v2426 = vunpack.c.l.b16 %v2294
    %v2427 = vunpack.c.l.b16 %v2295
    %v2428 = vunpack.c.l.b16 %v2296
    %v2429 = vunpack.c.l.b16 %v2297
    %v2430 = vunpack.c.l.b16 %v2298
    %v2431 = vunpack.c.l.b16 %v2299
    %v2432 = vunpack.c.l.b16 %v2300
    %v2433 = vunpack.c.l.b16 %v2301
    %v2434 = vunpack.c.l.b16 %v2302
    %v2435 = vunpack.c.l.b16 %v2303
    %v2436 = vunpack.c.l.b16 %v2304
    %v2437 = vunpack.c.l.b16 %v2305
    %v2438 = vunpack.c.l.b16 %v2306
    %v2439 = vunpack.c.l.b16 %v2307
    %v2440 = vunpack.c.l.b16 %v2308
    %v2441 = vunpack.c.l.b16 %v2309
    %v2442 = vpack.c.b16 %v2379, %v2378
    %v2443 = vpack.c.b16 %v2381, %v2380
    %v2444 = vpack.c.b16 %v2383, %v2382
    %v2445 = vpack.c.b16 %v2385, %v2384
    %v2446 = vpack.c.b16 %v2387, %v2386
    %v2447 = vpack.c.b16 %v2389, %v2388
    %v2448 = vpack.c.b16 %v2391, %v2390
    %v2449 = vpack.c.b16 %v2393, %v2392
    %v2450 = vpack.c.b16 %v2395, %v2394
    %v2451 = vpack.c.b16 %v2397, %v2396
    %v2452 = vpack.c.b16 %v2399, %v2398
    %v2453 = vpack.c.b16 %v2401, %v2400
    %v2454 = vpack.c.b16 %v2403, %v2402
    %v2455 = vpack.c.b16 %v2405, %v2404
    %v2456 = vpack.c.b16 %v2407, %v2406
    %v2457 = vpack.c.b16 %v2409, %v2408
    %v2458 = vpack.c.b16 %v2411, %v2410
    %v2459 = vpack.c.b16 %v2413, %v2412
    %v2460 = vpack.c.b16 %v2415, %v2414
    %v2461 = vpack.c.b16 %v2417, %v2416
    %v2462 = vpack.c.b16 %v2419, %v2418
    %v2463 = vpack.c.b16 %v2421, %v2420
    %v2464 = vpack.c.b16 %v2423, %v2422
    %v2465 = vpack.c.b16 %v2425, %v2424
    %v2466 = vpack.c.b16 %v2427, %v2426
    %v2467 = vpack.c.b16 %v2429, %v2428
    %v2468 = vpack.c.b16 %v2431, %v2430
    %v2469 = vpack.c.b16 %v2433, %v2432
    %v2470 = vpack.c.b16 %v2435, %v2434
    %v2471 = vpack.c.b16 %v2437, %v2436
    %v2472 = vpack.c.b16 %v2439, %v2438
    %v2473 = vpack.c.b16 %v2441, %v2440
    %vm2505 = vcmask 1014784
    %v2507 = vsel %vm2505, %v2245, 0
    %v2510 = vsel %vm239, %v2473, 0
    %2512 = vmatpush.bf16.msra.mxu0 %v2449
    %2513 = vmatpush.bf16.msra.mxu0 %v2448
    %2514 = vmatpush.bf16.msra.mxu0 %v2447
    %2515 = vmatpush.bf16.msra.mxu0 %v2446
    %2516 = vmatpush.bf16.msra.mxu0 %v2445
    %2517 = vmatpush.bf16.msra.mxu0 %v2444
    %2518 = vmatpush.bf16.msra.mxu0 %v2443
    %2519 = vmatpush.bf16.msra.mxu0 %v2442
    %2520 = vmatmul.bf16.gmra.mxu0 %v2242
    %v2521 = vpop.f32.mrf.mxu0
    %v2522 = vadd.f32 %v2312, %v2521
    %v2523 = vpop.f32.mrf.mxu0
    %2524 = vdwg.mxu0
    %2525 = vmatpush.bf16.msra.mxu0 %v2457
    %2526 = vmatpush.bf16.msra.mxu0 %v2456
    %2527 = vmatpush.bf16.msra.mxu0 %v2455
    %2528 = vmatpush.bf16.msra.mxu0 %v2454
    %2529 = vmatpush.bf16.msra.mxu0 %v2453
    %2530 = vmatpush.bf16.msra.mxu0 %v2452
    %2531 = vmatpush.bf16.msra.mxu0 %v2451
    %2532 = vmatpush.bf16.msra.mxu0 %v2450
    %2533 = vmatmul.bf16.gmra.mxu0 %v2243
    %v2534 = vpop.f32.mrf.mxu0
    %v2535 = vadd.f32 %v2522, %v2534
    %v2536 = vpop.f32.mrf.mxu0
    %2537 = vdwg.mxu0
    %2538 = vmatpush.bf16.msra.mxu0 %v2465
    %2539 = vmatpush.bf16.msra.mxu0 %v2464
    %2540 = vmatpush.bf16.msra.mxu0 %v2463
    %2541 = vmatpush.bf16.msra.mxu0 %v2462
    %2542 = vmatpush.bf16.msra.mxu0 %v2461
    %2543 = vmatpush.bf16.msra.mxu0 %v2460
    %2544 = vmatpush.bf16.msra.mxu0 %v2459
    %2545 = vmatpush.bf16.msra.mxu0 %v2458
    %2546 = vmatmul.bf16.gmra.mxu0 %v2244
    %v2547 = vpop.f32.mrf.mxu0
    %v2548 = vadd.f32 %v2535, %v2547
    %v2549 = vpop.f32.mrf.mxu0
    %2550 = vdwg.mxu0
    %2551 = vmatpush.bf16.msra.mxu0 %v2510
    %2552 = vmatpush.bf16.msra.mxu0 %v2472
    %2553 = vmatpush.bf16.msra.mxu0 %v2471
    %2554 = vmatpush.bf16.msra.mxu0 %v2470
    %2555 = vmatpush.bf16.msra.mxu0 %v2469
    %2556 = vmatpush.bf16.msra.mxu0 %v2468
    %2557 = vmatpush.bf16.msra.mxu0 %v2467
    %2558 = vmatpush.bf16.msra.mxu0 %v2466
    %2559 = vmatmul.bf16.gmra.mxu0 %v2507
    %v2560 = vpop.f32.mrf.mxu0
    %v2561 = vadd.f32 %v2548, %v2560
    %v2562 = vpop.f32.mrf.mxu0
    %2563 = vdwg.mxu0
    %v2564 = vmax.f32 %v2561, 0.0
    %v2565 = vld [vmem:[%s7] sm:$0x3]
    %v2566 = vperm.slane %v2565, 0
    %v2567 = vmul.f32 %v2564, %v2566
    %vm2568 = vcmask 523264
    %v2569 = vsel %vm2568, %v2567, 0.0
    %2570 = vadd.xlane.f32.xlu0 %v2569
    %v2571 = vpop.xlane.xlu0 %2570
    %s2572 = sld [smem:[#allocation2]]
    %v2573 = vstv %s2572
    %v2574 = vadd.f32 %v2571, %v2573
    %v2575 = vmax.f32 %v2574, 0.0
    %v2576 = vperm.slane %v2565, 1
    %v2577 = vmul.f32 %v2564, %v2576
    %v2578 = vsel %vm2568, %v2577, 0.0
    %2579 = vadd.xlane.f32.xlu0 %v2578
    %v2580 = vpop.xlane.xlu0 %2579
    %s2581 = sld [smem:[#allocation2 + $0x1]]
    %v2582 = vstv %s2581
    %v2583 = vadd.f32 %v2580, %v2582
    %v2584 = vmax.f32 %v2583, 0.0
    %s2585 = sld [smem:[#allocation2 + $0x2]]
    %v2586 = vstv %s2585
    %v2587 = vmul.f32 %v2575, %v2586
    %s2588 = sld [smem:[#allocation2 + $0x3]]
    %v2589 = vstv %s2588
    %v2590 = vmul.f32 %v2584, %v2589
    %v2591 = vadd.f32 %v2587, %v2590
    %s2592 = sld [smem:[#allocation2 + $0x4]]
    %v2593 = vstv %s2592
    %v2594 = vadd.f32 %v2591, %v2593
    %v2595 = vlaneseq
    %v2596 = vand.u32 %v2595, 127
    %vm2597 = vcmp.eq.s32.totalorder %v2596, 0
    %vm2598 = vcmp.eq.s32.totalorder %v2596, 1
    %v2599 = vsub.f32 1.0, %v2594
    %v2600 = vsel %vm2598, %v2599, 0.0
    %v2601 = vsel %vm2597, %v2594, %v2600
    %2602 = vst [vmem:[%s9] sm:$0xff] %v2601
    // Predicated region
    $region42: #{_pallas_forward.1} parent=1 // pred_check
      _
    $region43: #{_pallas_forward.1} parent=1 // pred_check_branch
      %2604 = sbr.rel (0) target = $region45
    $region44: #{_pallas_forward.1} parent=1 // pred_region
      _
    $region45: #{_pallas_forward.1} parent=1 // pred_fallthru
      _
    // Predicated region
    $region46: #{_pallas_forward.1} parent=1 // pred_check
      _
    $region47: #{_pallas_forward.1} parent=1 // pred_check_branch
      %2606 = sbr.rel (0) target = $region49
    $region48: #{_pallas_forward.1} parent=1 // pred_region
      _
    $region49: #{_pallas_forward.1} parent=1 // pred_fallthru
      _
    %2607 = vsyncpa [#allocation3], 1

</llo_original>
